<compile_context>
chip_gen: v7x
topology: tpu7x:2x2x1
jax: 0.10.0
libtpu: 0.0.40
codegen_flags: <defaults>
</compile_context>

<pallas_src>
import functools

import jax
import jax.numpy as jnp
from jax import lax
from jax.experimental import pallas as pl
from jax.experimental.pallas import tpu as pltpu


def _mm(a, b):
    """MXU matmul: bf16 operands, f32 accumulation."""
    return jnp.dot(a.astype(jnp.bfloat16), b, preferred_element_type=jnp.float32)


# -----------------------------------------------------------------------------
# Fused Pallas kernel: stacked-LSTM wavefront recurrence + MLP head.
# -----------------------------------------------------------------------------
def _make_fused_kernel(T, Bp, H, L):
    four_h = 4 * H
    W = L * four_h                       # full gate width (all layers)

    def kernel(x_ref, wih0_ref, bias_ref, wrec_ref,
               w1_ref, b1_ref, w2_ref, b2_ref, out_ref, gx_scr):
        # ---- hoisted input projection for ALL timesteps (one MXU matmul).
        # Columns >= 4H of wih0 are zero, so for layers >= 1 the gx_scr blocks
        # are just that layer's (time-invariant) combined bias.
        gx_scr[...] = _mm(x_ref[...], wih0_ref[...]) + bias_ref[...]

        wrec = wrec_ref[...]             # (L*H, W) bf16, loop-invariant RHS

        # ---- single-tanh gate activation constants (hoisted, full width).
        # sigmoid(x) = 0.5*tanh(0.5*x) + 0.5 ; the 'g' gate keeps plain tanh.
        lane = lax.broadcasted_iota(jnp.int32, (Bp, W), 1)
        lm = lane % four_h
        g_mask = (lm >= 2 * H) & (lm < 3 * H)
        pre = jnp.where(g_mask, 1.0, 0.5).astype(jnp.float32)   # input scale
        pmul = pre                                              # output scale
        padd = jnp.where(g_mask, 0.0, 0.5).astype(jnp.float32)  # output shift

        def gate_act(gates, s, m, a):
            return jnp.tanh(gates * s) * m + a      # one EUP pass for all gates

        def split_gates(act, l):
            b = l * four_h
            return (act[:, b:b + H], act[:, b + H:b + 2 * H],
                    act[:, b + 2 * H:b + 3 * H], act[:, b + 3 * H:b + 4 * H])

        h = [jnp.zeros((Bp, H), jnp.float32) for _ in range(L)]
        c = [jnp.zeros((Bp, H), jnp.float32) for _ in range(L)]

        # ---- peeled wavefront step w = 0: only layer 0 at t = 0, h0 = c0 = 0
        # -> no recurrent matmul and no f*c term.
        g0 = gx_scr[pl.ds(0, Bp), pl.ds(0, four_h)]
        a0 = gate_act(g0, pre[:, :four_h], pmul[:, :four_h], padd[:, :four_h])
        i_g, f_g, g_g, o_g = split_gates(a0, 0)
        c[0] = i_g * g_g
        h[0] = o_g * jnp.tanh(c[0])

        # ---- wavefront: at step w, layer l handles time t = w - l.  All
        # active layers share ONE block matmul (recurrence + inter-layer
        # input projection) and ONE full-vreg gate nonlinearity.
        # TODO(synk): for large T, run the steady-state region as a
        # partially-unrolled fori_loop instead of full Python unroll.
        for w in range(1, T + L - 1):
            lhs = jnp.concatenate(h, axis=1)            # (Bp, L*H)
            mat = _mm(lhs, wrec)                        # (Bp, W) f32
            row = min(w, T - 1) * Bp                    # static, sublane-aligned
            gates = gx_scr[pl.ds(row, Bp), :] + mat     # (Bp, W)
            act = gate_act(gates, pre, pmul, padd)
            for l in range(L):
                t = w - l
                if 0 <= t < T:                          # static activity test
                    i_g, f_g, g_g, o_g = split_gates(act, l)
                    cn = i_g * g_g if t == 0 else f_g * c[l] + i_g * g_g
                    c[l] = cn
                    h[l] = o_g * jnp.tanh(cn)

        # ---- hn = (num_layers, B, H).view(-1, H): layer-major rows.
        hn = jnp.concatenate(h, axis=0)                 # (L*Bp, H)

        # ---- MLP head fused in: out = fc(relu(fc_1(relu(hn)))).
        z = jnp.maximum(hn, 0.0)
        z = jnp.maximum(_mm(z, w1_ref[...]) + b1_ref[...], 0.0)
        out_ref[...] = _mm(z, w2_ref[...]) + b2_ref[...]   # (L*Bp, Cp) lane-dense

    return kernel


# -----------------------------------------------------------------------------
# Wrapper
# -----------------------------------------------------------------------------
def _round_up(x, m):
    return ((x + m - 1) // m) * m


@functools.partial(jax.jit, static_argnames=("num_layers", "hidden_size"))
def lstm1_forward(x, params, *, num_layers, hidden_size):
    """x: (B, T, input_size) batch_first, like the PyTorch module."""
    B, T, D = x.shape
    H = hidden_size
    L = num_layers
    four_h = 4 * H
    W = L * four_h
    w1, b1, w2, b2 = params["head"]
    C = w2.shape[1]                       # num_classes (static under jit)
    Cp = _round_up(C, 128)                # lane-dense output width
    Bp = _round_up(B, 8)                  # pad batch to a full sublane tile

    # Tiny layout plumbing (few KB): time-major + batch pad + flatten so the
    # kernel only ever sees 2-D, sublane-aligned operands.
    x_tm = jnp.transpose(x, (1, 0, 2))                     # (T, B, D)
    x_tm = jnp.pad(x_tm, ((0, 0), (0, Bp - B), (0, 0)))    # (T, Bp, D)
    x_flat = x_tm.reshape(T * Bp, D)                       # row t*Bp + b

    # --- pack weights for the fused wavefront kernel (one-time, tiny) -------
    # Layer-0 input projection padded to the full gate width W.
    wih0_big = jnp.zeros((D, W), jnp.bfloat16).at[:, :four_h].set(
        params["lstm"][0][0])
    # Combined biases of all layers, laid out per 4H block.
    bias_big = jnp.zeros((1, W), jnp.float32)
    for l in range(L):
        bias_big = bias_big.at[:, l * four_h:(l + 1) * four_h].set(
            params["lstm"][l][2])
    # Block recurrence matrix: row block l carries W_hh^l (own recurrence)
    # and W_ih^{l+1} (input projection of the layer above).
    wrec = jnp.zeros((L * H, W), jnp.bfloat16)
    for l in range(L):
        wrec = wrec.at[l * H:(l + 1) * H,
                       l * four_h:(l + 1) * four_h].set(params["lstm"][l][1])
        if l + 1 < L:
            wrec = wrec.at[l * H:(l + 1) * H,
                           (l + 1) * four_h:(l + 2) * four_h].set(
                params["lstm"][l + 1][0])
    # Lane-dense head: pad the class dimension to Cp.
    w2p = jnp.zeros((w2.shape[0], Cp), jnp.bfloat16).at[:, :C].set(w2)
    b2p = jnp.zeros((1, Cp), jnp.float32).at[:, :C].set(b2)

    out_p = pl.pallas_call(
        _make_fused_kernel(T, Bp, H, L),
        out_shape=jax.ShapeDtypeStruct((L * Bp, Cp), jnp.float32),
        scratch_shapes=[
            pltpu.VMEM((T * Bp, W), jnp.float32),   # hoisted gate pre-activations
        ],
    )(x_flat, wih0_big, bias_big, wrec, w1, b1, w2p, b2p)

    # Drop padded batch rows / padded classes; keep PyTorch's hn.view(-1, H) order.
    return out_p.reshape(L, Bp, Cp)[:, :B, :C].reshape(L * B, C)


# -----------------------------------------------------------------------------
# Pure-JAX reference (same bf16-weight / f32-accumulate math) for sanity check
# -----------------------------------------------------------------------------
def lstm1_reference(x, params, *, num_layers, hidden_size):
    B, T, _ = x.shape
    H = hidden_size
    layer_in = jnp.transpose(x, (1, 0, 2))   # (T, B, D)
    finals = []
    for layer in range(num_layers):
        wih_t, whh_t, b = params["lstm"][layer]
        Din = layer_in.shape[-1]
        gx = _mm(layer_in.reshape(T * B, Din), wih_t).reshape(T, B, 4 * H) + b

        def step(carry, gx_t, _whh=whh_t):
            h, c = carry
            gates = gx_t + _mm(h, _whh)
            i = jax.nn.sigmoid(gates[:, 0 * H:1 * H])
            f = jax.nn.sigmoid(gates[:, 1 * H:2 * H])
            g = jnp.tanh(gates[:, 2 * H:3 * H])
            o = jax.nn.sigmoid(gates[:, 3 * H:4 * H])
            c = f * c + i * g
            h = o * jnp.tanh(c)
            return (h, c), h

        init = (jnp.zeros((B, H), jnp.float32), jnp.zeros((B, H), jnp.float32))
        (h_fin, _), hseq = jax.lax.scan(step, init, gx)
        finals.append(h_fin)
        layer_in = hseq
    hn = jnp.concatenate(finals, axis=0)
    w1, b1, w2, b2 = params["head"]
    z = jnp.maximum(hn, 0.0)
    z = jnp.maximum(_mm(z, w1) + b1, 0.0)
    return _mm(z, w2) + b2


# -----------------------------------------------------------------------------
# Deterministic parameter init (shapes follow nn.LSTM / nn.Linear)
# -----------------------------------------------------------------------------
def init_params(key, *, input_size, hidden_size, num_layers, num_classes):
    params = {"lstm": [], "head": None}
    H = hidden_size
    for layer in range(num_layers):
        D = input_size if layer == 0 else H
        key, k1, k2, k3, k4 = jax.random.split(key, 5)
        s = 1.0 / jnp.sqrt(H)
        w_ih = jax.random.uniform(k1, (4 * H, D), jnp.float32, -s, s)
        w_hh = jax.random.uniform(k2, (4 * H, H), jnp.float32, -s, s)
        b_ih = jax.random.uniform(k3, (4 * H,), jnp.float32, -s, s)
        b_hh = jax.random.uniform(k4, (4 * H,), jnp.float32, -s, s)
        params["lstm"].append((
            w_ih.T.astype(jnp.bfloat16),      # (D, 4H)  MXU operand
            w_hh.T.astype(jnp.bfloat16),      # (H, 4H)  MXU operand
            (b_ih + b_hh)[None, :],           # (1, 4H)  f32 combined bias
        ))
    key, k1, k2, k3, k4 = jax.random.split(key, 5)
    s1 = 1.0 / jnp.sqrt(H)
    w1 = jax.random.uniform(k1, (128, H), jnp.float32, -s1, s1)
    b1 = jax.random.uniform(k2, (128,), jnp.float32, -s1, s1)
    s2 = 1.0 / jnp.sqrt(128.0)
    w2 = jax.random.uniform(k3, (num_classes, 128), jnp.float32, -s2, s2)
    b2 = jax.random.uniform(k4, (num_classes,), jnp.float32, -s2, s2)
    params["head"] = (w1.T.astype(jnp.bfloat16), b1[None, :],
                      w2.T.astype(jnp.bfloat16), b2[None, :])
    return params


# -----------------------------------------------------------------------------
if __name__ == "__main__":
    num_classes = 10
    input_size = 16
    hidden_size = 32
    num_layers = 2
    B, T = 2, 8

    key = jax.random.PRNGKey(0)
    key, kx = jax.random.split(key)
    x = jax.random.normal(kx, (B, T, input_size), jnp.float32)

    params = init_params(
        key,
        input_size=input_size,
        hidden_size=hidden_size,
        num_layers=num_layers,
        num_classes=num_classes,
    )

    out = lstm1_forward(x, params, num_layers=num_layers, hidden_size=hidden_size)
    out = jax.block_until_ready(out)

    ref = lstm1_reference(x, params, num_layers=num_layers, hidden_size=hidden_size)
    assert out.shape == (num_layers * B, num_classes), out.shape
    assert jnp.allclose(out, ref, atol=1e-2, rtol=1e-2), "mismatch vs reference"

    print("KERNEL_OK")
</pallas_src>

<mosaic_0001>
module attributes {stable_mosaic.version = 11 : i64} {
  func.func @kernel(%arg0: memref<64x16xf32, #tpu.memory_space<vmem>>, %arg1: memref<16x256xbf16, #tpu.memory_space<vmem>>, %arg2: memref<1x256xf32, #tpu.memory_space<vmem>>, %arg3: memref<64x256xbf16, #tpu.memory_space<vmem>>, %arg4: memref<32x128xbf16, #tpu.memory_space<vmem>>, %arg5: memref<1x128xf32, #tpu.memory_space<vmem>>, %arg6: memref<128x128xbf16, #tpu.memory_space<vmem>>, %arg7: memref<1x128xf32, #tpu.memory_space<vmem>>, %arg8: memref<16x128xf32, #tpu.memory_space<vmem>>, %arg9: memref<64x256xf32, #tpu.memory_space<vmem>>) attributes {dimension_semantics = [], scalar_prefetch = 0 : i64, scratch_operands = 1 : i64, tpu.core_type = #tpu.core_type<tc>} {
    %c0 = arith.constant 0 : index
    %c0_0 = arith.constant 0 : index
    %0 = vector.load %arg0[%c0, %c0_0] : memref<64x16xf32, #tpu.memory_space<vmem>>, vector<64x16xf32>
    %c0_1 = arith.constant 0 : index
    %c0_2 = arith.constant 0 : index
    %1 = vector.load %arg1[%c0_1, %c0_2] : memref<16x256xbf16, #tpu.memory_space<vmem>>, vector<16x256xbf16>
    %2 = arith.truncf %0 : vector<64x16xf32> to vector<64x16xbf16>
    %cst = arith.constant dense<0.000000e+00> : vector<64x256xf32>
    %3 = tpu.matmul %2, %1, %cst {dimension_numbers = #tpu.dot_dimension_numbers<[1], [0], [0], [1], [0, 0, 1, 1], [], []>} : vector<64x16xbf16>, vector<16x256xbf16>, vector<64x256xf32> -> vector<64x256xf32>
    %c0_3 = arith.constant 0 : index
    %c0_4 = arith.constant 0 : index
    %4 = vector.load %arg2[%c0_3, %c0_4] : memref<1x256xf32, #tpu.memory_space<vmem>>, vector<1x256xf32>
    %5 = vector.broadcast %4 : vector<1x256xf32> to vector<64x256xf32>
    %6 = arith.addf %3, %5 : vector<64x256xf32>
    %c0_5 = arith.constant 0 : index
    %c0_6 = arith.constant 0 : index
    %7 = vector.load %arg9[%c0_5, %c0_6] : memref<64x256xf32, #tpu.memory_space<vmem>>, vector<64x256xf32>
    tpu.vector_store %arg9[%c0_5, %c0_6], %6 {strides = array<i32>} : memref<64x256xf32, #tpu.memory_space<vmem>>, vector<64x256xf32>,
    %c0_7 = arith.constant 0 : index
    %c0_8 = arith.constant 0 : index
    %8 = vector.load %arg3[%c0_7, %c0_8] : memref<64x256xbf16, #tpu.memory_space<vmem>>, vector<64x256xbf16>
    %9 = tpu.iota {dimensions = array<i32: 1>} : vector<8x256xi32>
    %c128_i32 = arith.constant 128 : i32
    %c0_i32 = arith.constant 0 : i32
    %10 = arith.cmpi eq, %c128_i32, %c0_i32 : i32
    %c1_i32 = arith.constant 1 : i32
    %11 = arith.select %10, %c1_i32, %c128_i32 : i32
    %12 = vector.broadcast %11 : i32 to vector<8x256xi32>
    %13 = arith.remsi %9, %12 : vector<8x256xi32>
    %c0_i32_9 = arith.constant 0 : i32
    %14 = vector.broadcast %c0_i32_9 : i32 to vector<8x256xi32>
    %15 = arith.cmpi ne, %13, %14 : vector<8x256xi32>
    %c0_i32_10 = arith.constant 0 : i32
    %16 = vector.broadcast %c0_i32_10 : i32 to vector<8x256xi32>
    %17 = arith.cmpi slt, %13, %16 : vector<8x256xi32>
    %c0_i32_11 = arith.constant 0 : i32
    %18 = arith.cmpi slt, %11, %c0_i32_11 : i32
    %19 = vector.broadcast %18 : i1 to vector<8x256xi1>
    %20 = vector.broadcast %19 : vector<8x256xi1> to vector<8x256xi1>
    %21 = arith.xori %17, %20 : vector<8x256xi1>
    %22 = arith.andi %21, %15 : vector<8x256xi1>
    %23 = vector.broadcast %11 : i32 to vector<8x256xi32>
    %24 = arith.addi %13, %23 : vector<8x256xi32>
    %25 = arith.select %22, %24, %13 : vector<8x256xi1>, vector<8x256xi32>
    %c64_i32 = arith.constant 64 : i32
    %26 = vector.broadcast %c64_i32 : i32 to vector<8x256xi32>
    %27 = arith.cmpi sge, %25, %26 : vector<8x256xi32>
    %c96_i32 = arith.constant 96 : i32
    %28 = vector.broadcast %c96_i32 : i32 to vector<8x256xi32>
    %29 = arith.cmpi slt, %25, %28 : vector<8x256xi32>
    %30 = arith.andi %27, %29 : vector<8x256xi1>
    %cst_12 = arith.constant 1.000000e+00 : f32
    %cst_13 = arith.constant 5.000000e-01 : f32
    %31 = vector.broadcast %cst_12 : f32 to vector<8x256xf32>
    %32 = vector.broadcast %cst_13 : f32 to vector<8x256xf32>
    %33 = arith.select %30, %31, %32 : vector<8x256xi1>, vector<8x256xf32>
    %cst_14 = arith.constant 0.000000e+00 : f32
    %cst_15 = arith.constant 5.000000e-01 : f32
    %34 = vector.broadcast %cst_14 : f32 to vector<8x256xf32>
    %35 = vector.broadcast %cst_15 : f32 to vector<8x256xf32>
    %36 = arith.select %30, %34, %35 : vector<8x256xi1>, vector<8x256xf32>
    %cst_16 = arith.constant 0.000000e+00 : f32
    %37 = vector.broadcast %cst_16 : f32 to vector<8x32xf32>
    %c0_17 = arith.constant 0 : index
    %c0_18 = arith.constant 0 : index
    %38 = vector.load %arg9[%c0_17, %c0_18] : memref<64x256xf32, #tpu.memory_space<vmem>>, vector<8x128xf32>
    %39 = vector.extract_strided_slice %33 {offsets = [0, 0], sizes = [8, 128], strides = [1, 1]} : vector<8x256xf32> to vector<8x128xf32>
    %40 = vector.extract_strided_slice %33 {offsets = [0, 0], sizes = [8, 128], strides = [1, 1]} : vector<8x256xf32> to vector<8x128xf32>
    %41 = vector.extract_strided_slice %36 {offsets = [0, 0], sizes = [8, 128], strides = [1, 1]} : vector<8x256xf32> to vector<8x128xf32>
    %42 = arith.mulf %38, %39 : vector<8x128xf32>
    %43 = math.tanh %42 : vector<8x128xf32>
    %44 = arith.mulf %43, %40 : vector<8x128xf32>
    %45 = arith.addf %44, %41 : vector<8x128xf32>
    %46 = vector.extract_strided_slice %45 {offsets = [0, 0], sizes = [8, 32], strides = [1, 1]} : vector<8x128xf32> to vector<8x32xf32>
    %47 = vector.extract_strided_slice %45 {offsets = [0, 64], sizes = [8, 32], strides = [1, 1]} : vector<8x128xf32> to vector<8x32xf32>
    %48 = vector.extract_strided_slice %45 {offsets = [0, 96], sizes = [8, 32], strides = [1, 1]} : vector<8x128xf32> to vector<8x32xf32>
    %49 = arith.mulf %46, %47 : vector<8x32xf32>
    %50 = math.tanh %49 : vector<8x32xf32>
    %51 = arith.mulf %48, %50 : vector<8x32xf32>
    %52 = tpu.concatenate %51, %37 in 1 : vector<8x32xf32>, vector<8x32xf32> -> vector<8x64xf32>
    %53 = arith.truncf %52 : vector<8x64xf32> to vector<8x64xbf16>
    %cst_19 = arith.constant dense<0.000000e+00> : vector<8x256xf32>
    %54 = tpu.matmul %53, %8, %cst_19 {dimension_numbers = #tpu.dot_dimension_numbers<[1], [0], [0], [1], [0, 0, 1, 1], [], []>} : vector<8x64xbf16>, vector<64x256xbf16>, vector<8x256xf32> -> vector<8x256xf32>
    %c8 = arith.constant 8 : index
    %c0_20 = arith.constant 0 : index
    %55 = vector.load %arg9[%c8, %c0_20] : memref<64x256xf32, #tpu.memory_space<vmem>>, vector<8x256xf32>
    %56 = arith.addf %55, %54 : vector<8x256xf32>
    %57 = arith.mulf %56, %33 : vector<8x256xf32>
    %58 = math.tanh %57 : vector<8x256xf32>
    %59 = arith.mulf %58, %33 : vector<8x256xf32>
    %60 = arith.addf %59, %36 : vector<8x256xf32>
    %61 = vector.extract_strided_slice %60 {offsets = [0, 0], sizes = [8, 32], strides = [1, 1]} : vector<8x256xf32> to vector<8x32xf32>
    %62 = vector.extract_strided_slice %60 {offsets = [0, 32], sizes = [8, 32], strides = [1, 1]} : vector<8x256xf32> to vector<8x32xf32>
    %63 = vector.extract_strided_slice %60 {offsets = [0, 64], sizes = [8, 32], strides = [1, 1]} : vector<8x256xf32> to vector<8x32xf32>
    %64 = vector.extract_strided_slice %60 {offsets = [0, 96], sizes = [8, 32], strides = [1, 1]} : vector<8x256xf32> to vector<8x32xf32>
    %65 = arith.mulf %62, %49 : vector<8x32xf32>
    %66 = arith.mulf %61, %63 : vector<8x32xf32>
    %67 = arith.addf %65, %66 : vector<8x32xf32>
    %68 = math.tanh %67 : vector<8x32xf32>
    %69 = arith.mulf %64, %68 : vector<8x32xf32>
    %70 = vector.extract_strided_slice %60 {offsets = [0, 128], sizes = [8, 32], strides = [1, 1]} : vector<8x256xf32> to vector<8x32xf32>
    %71 = vector.extract_strided_slice %60 {offsets = [0, 192], sizes = [8, 32], strides = [1, 1]} : vector<8x256xf32> to vector<8x32xf32>
    %72 = vector.extract_strided_slice %60 {offsets = [0, 224], sizes = [8, 32], strides = [1, 1]} : vector<8x256xf32> to vector<8x32xf32>
    %73 = arith.mulf %70, %71 : vector<8x32xf32>
    %74 = math.tanh %73 : vector<8x32xf32>
    %75 = arith.mulf %72, %74 : vector<8x32xf32>
    %76 = tpu.concatenate %69, %75 in 1 : vector<8x32xf32>, vector<8x32xf32> -> vector<8x64xf32>
    %77 = arith.truncf %76 : vector<8x64xf32> to vector<8x64xbf16>
    %cst_21 = arith.constant dense<0.000000e+00> : vector<8x256xf32>
    %78 = tpu.matmul %77, %8, %cst_21 {dimension_numbers = #tpu.dot_dimension_numbers<[1], [0], [0], [1], [0, 0, 1, 1], [], []>} : vector<8x64xbf16>, vector<64x256xbf16>, vector<8x256xf32> -> vector<8x256xf32>
    %c16 = arith.constant 16 : index
    %c0_22 = arith.constant 0 : index
    %79 = vector.load %arg9[%c16, %c0_22] : memref<64x256xf32, #tpu.memory_space<vmem>>, vector<8x256xf32>
    %80 = arith.addf %79, %78 : vector<8x256xf32>
    %81 = arith.mulf %80, %33 : vector<8x256xf32>
    %82 = math.tanh %81 : vector<8x256xf32>
    %83 = arith.mulf %82, %33 : vector<8x256xf32>
    %84 = arith.addf %83, %36 : vector<8x256xf32>
    %85 = vector.extract_strided_slice %84 {offsets = [0, 0], sizes = [8, 32], strides = [1, 1]} : vector<8x256xf32> to vector<8x32xf32>
    %86 = vector.extract_strided_slice %84 {offsets = [0, 32], sizes = [8, 32], strides = [1, 1]} : vector<8x256xf32> to vector<8x32xf32>
    %87 = vector.extract_strided_slice %84 {offsets = [0, 64], sizes = [8, 32], strides = [1, 1]} : vector<8x256xf32> to vector<8x32xf32>
    %88 = vector.extract_strided_slice %84 {offsets = [0, 96], sizes = [8, 32], strides = [1, 1]} : vector<8x256xf32> to vector<8x32xf32>
    %89 = arith.mulf %86, %67 : vector<8x32xf32>
    %90 = arith.mulf %85, %87 : vector<8x32xf32>
    %91 = arith.addf %89, %90 : vector<8x32xf32>
    %92 = math.tanh %91 : vector<8x32xf32>
    %93 = arith.mulf %88, %92 : vector<8x32xf32>
    %94 = vector.extract_strided_slice %84 {offsets = [0, 128], sizes = [8, 32], strides = [1, 1]} : vector<8x256xf32> to vector<8x32xf32>
    %95 = vector.extract_strided_slice %84 {offsets = [0, 160], sizes = [8, 32], strides = [1, 1]} : vector<8x256xf32> to vector<8x32xf32>
    %96 = vector.extract_strided_slice %84 {offsets = [0, 192], sizes = [8, 32], strides = [1, 1]} : vector<8x256xf32> to vector<8x32xf32>
    %97 = vector.extract_strided_slice %84 {offsets = [0, 224], sizes = [8, 32], strides = [1, 1]} : vector<8x256xf32> to vector<8x32xf32>
    %98 = arith.mulf %95, %73 : vector<8x32xf32>
    %99 = arith.mulf %94, %96 : vector<8x32xf32>
    %100 = arith.addf %98, %99 : vector<8x32xf32>
    %101 = math.tanh %100 : vector<8x32xf32>
    %102 = arith.mulf %97, %101 : vector<8x32xf32>
    %103 = tpu.concatenate %93, %102 in 1 : vector<8x32xf32>, vector<8x32xf32> -> vector<8x64xf32>
    %104 = arith.truncf %103 : vector<8x64xf32> to vector<8x64xbf16>
    %cst_23 = arith.constant dense<0.000000e+00> : vector<8x256xf32>
    %105 = tpu.matmul %104, %8, %cst_23 {dimension_numbers = #tpu.dot_dimension_numbers<[1], [0], [0], [1], [0, 0, 1, 1], [], []>} : vector<8x64xbf16>, vector<64x256xbf16>, vector<8x256xf32> -> vector<8x256xf32>
    %c24 = arith.constant 24 : index
    %c0_24 = arith.constant 0 : index
    %106 = vector.load %arg9[%c24, %c0_24] : memref<64x256xf32, #tpu.memory_space<vmem>>, vector<8x256xf32>
    %107 = arith.addf %106, %105 : vector<8x256xf32>
    %108 = arith.mulf %107, %33 : vector<8x256xf32>
    %109 = math.tanh %108 : vector<8x256xf32>
    %110 = arith.mulf %109, %33 : vector<8x256xf32>
    %111 = arith.addf %110, %36 : vector<8x256xf32>
    %112 = vector.extract_strided_slice %111 {offsets = [0, 0], sizes = [8, 32], strides = [1, 1]} : vector<8x256xf32> to vector<8x32xf32>
    %113 = vector.extract_strided_slice %111 {offsets = [0, 32], sizes = [8, 32], strides = [1, 1]} : vector<8x256xf32> to vector<8x32xf32>
    %114 = vector.extract_strided_slice %111 {offsets = [0, 64], sizes = [8, 32], strides = [1, 1]} : vector<8x256xf32> to vector<8x32xf32>
    %115 = vector.extract_strided_slice %111 {offsets = [0, 96], sizes = [8, 32], strides = [1, 1]} : vector<8x256xf32> to vector<8x32xf32>
    %116 = arith.mulf %113, %91 : vector<8x32xf32>
    %117 = arith.mulf %112, %114 : vector<8x32xf32>
    %118 = arith.addf %116, %117 : vector<8x32xf32>
    %119 = math.tanh %118 : vector<8x32xf32>
    %120 = arith.mulf %115, %119 : vector<8x32xf32>
    %121 = vector.extract_strided_slice %111 {offsets = [0, 128], sizes = [8, 32], strides = [1, 1]} : vector<8x256xf32> to vector<8x32xf32>
    %122 = vector.extract_strided_slice %111 {offsets = [0, 160], sizes = [8, 32], strides = [1, 1]} : vector<8x256xf32> to vector<8x32xf32>
    %123 = vector.extract_strided_slice %111 {offsets = [0, 192], sizes = [8, 32], strides = [1, 1]} : vector<8x256xf32> to vector<8x32xf32>
    %124 = vector.extract_strided_slice %111 {offsets = [0, 224], sizes = [8, 32], strides = [1, 1]} : vector<8x256xf32> to vector<8x32xf32>
    %125 = arith.mulf %122, %100 : vector<8x32xf32>
    %126 = arith.mulf %121, %123 : vector<8x32xf32>
    %127 = arith.addf %125, %126 : vector<8x32xf32>
    %128 = math.tanh %127 : vector<8x32xf32>
    %129 = arith.mulf %124, %128 : vector<8x32xf32>
    %130 = tpu.concatenate %120, %129 in 1 : vector<8x32xf32>, vector<8x32xf32> -> vector<8x64xf32>
    %131 = arith.truncf %130 : vector<8x64xf32> to vector<8x64xbf16>
    %cst_25 = arith.constant dense<0.000000e+00> : vector<8x256xf32>
    %132 = tpu.matmul %131, %8, %cst_25 {dimension_numbers = #tpu.dot_dimension_numbers<[1], [0], [0], [1], [0, 0, 1, 1], [], []>} : vector<8x64xbf16>, vector<64x256xbf16>, vector<8x256xf32> -> vector<8x256xf32>
    %c32 = arith.constant 32 : index
    %c0_26 = arith.constant 0 : index
    %133 = vector.load %arg9[%c32, %c0_26] : memref<64x256xf32, #tpu.memory_space<vmem>>, vector<8x256xf32>
    %134 = arith.addf %133, %132 : vector<8x256xf32>
    %135 = arith.mulf %134, %33 : vector<8x256xf32>
    %136 = math.tanh %135 : vector<8x256xf32>
    %137 = arith.mulf %136, %33 : vector<8x256xf32>
    %138 = arith.addf %137, %36 : vector<8x256xf32>
    %139 = vector.extract_strided_slice %138 {offsets = [0, 0], sizes = [8, 32], strides = [1, 1]} : vector<8x256xf32> to vector<8x32xf32>
    %140 = vector.extract_strided_slice %138 {offsets = [0, 32], sizes = [8, 32], strides = [1, 1]} : vector<8x256xf32> to vector<8x32xf32>
    %141 = vector.extract_strided_slice %138 {offsets = [0, 64], sizes = [8, 32], strides = [1, 1]} : vector<8x256xf32> to vector<8x32xf32>
    %142 = vector.extract_strided_slice %138 {offsets = [0, 96], sizes = [8, 32], strides = [1, 1]} : vector<8x256xf32> to vector<8x32xf32>
    %143 = arith.mulf %140, %118 : vector<8x32xf32>
    %144 = arith.mulf %139, %141 : vector<8x32xf32>
    %145 = arith.addf %143, %144 : vector<8x32xf32>
    %146 = math.tanh %145 : vector<8x32xf32>
    %147 = arith.mulf %142, %146 : vector<8x32xf32>
    %148 = vector.extract_strided_slice %138 {offsets = [0, 128], sizes = [8, 32], strides = [1, 1]} : vector<8x256xf32> to vector<8x32xf32>
    %149 = vector.extract_strided_slice %138 {offsets = [0, 160], sizes = [8, 32], strides = [1, 1]} : vector<8x256xf32> to vector<8x32xf32>
    %150 = vector.extract_strided_slice %138 {offsets = [0, 192], sizes = [8, 32], strides = [1, 1]} : vector<8x256xf32> to vector<8x32xf32>
    %151 = vector.extract_strided_slice %138 {offsets = [0, 224], sizes = [8, 32], strides = [1, 1]} : vector<8x256xf32> to vector<8x32xf32>
    %152 = arith.mulf %149, %127 : vector<8x32xf32>
    %153 = arith.mulf %148, %150 : vector<8x32xf32>
    %154 = arith.addf %152, %153 : vector<8x32xf32>
    %155 = math.tanh %154 : vector<8x32xf32>
    %156 = arith.mulf %151, %155 : vector<8x32xf32>
    %157 = tpu.concatenate %147, %156 in 1 : vector<8x32xf32>, vector<8x32xf32> -> vector<8x64xf32>
    %158 = arith.truncf %157 : vector<8x64xf32> to vector<8x64xbf16>
    %cst_27 = arith.constant dense<0.000000e+00> : vector<8x256xf32>
    %159 = tpu.matmul %158, %8, %cst_27 {dimension_numbers = #tpu.dot_dimension_numbers<[1], [0], [0], [1], [0, 0, 1, 1], [], []>} : vector<8x64xbf16>, vector<64x256xbf16>, vector<8x256xf32> -> vector<8x256xf32>
    %c40 = arith.constant 40 : index
    %c0_28 = arith.constant 0 : index
    %160 = vector.load %arg9[%c40, %c0_28] : memref<64x256xf32, #tpu.memory_space<vmem>>, vector<8x256xf32>
    %161 = arith.addf %160, %159 : vector<8x256xf32>
    %162 = arith.mulf %161, %33 : vector<8x256xf32>
    %163 = math.tanh %162 : vector<8x256xf32>
    %164 = arith.mulf %163, %33 : vector<8x256xf32>
    %165 = arith.addf %164, %36 : vector<8x256xf32>
    %166 = vector.extract_strided_slice %165 {offsets = [0, 0], sizes = [8, 32], strides = [1, 1]} : vector<8x256xf32> to vector<8x32xf32>
    %167 = vector.extract_strided_slice %165 {offsets = [0, 32], sizes = [8, 32], strides = [1, 1]} : vector<8x256xf32> to vector<8x32xf32>
    %168 = vector.extract_strided_slice %165 {offsets = [0, 64], sizes = [8, 32], strides = [1, 1]} : vector<8x256xf32> to vector<8x32xf32>
    %169 = vector.extract_strided_slice %165 {offsets = [0, 96], sizes = [8, 32], strides = [1, 1]} : vector<8x256xf32> to vector<8x32xf32>
    %170 = arith.mulf %167, %145 : vector<8x32xf32>
    %171 = arith.mulf %166, %168 : vector<8x32xf32>
    %172 = arith.addf %170, %171 : vector<8x32xf32>
    %173 = math.tanh %172 : vector<8x32xf32>
    %174 = arith.mulf %169, %173 : vector<8x32xf32>
    %175 = vector.extract_strided_slice %165 {offsets = [0, 128], sizes = [8, 32], strides = [1, 1]} : vector<8x256xf32> to vector<8x32xf32>
    %176 = vector.extract_strided_slice %165 {offsets = [0, 160], sizes = [8, 32], strides = [1, 1]} : vector<8x256xf32> to vector<8x32xf32>
    %177 = vector.extract_strided_slice %165 {offsets = [0, 192], sizes = [8, 32], strides = [1, 1]} : vector<8x256xf32> to vector<8x32xf32>
    %178 = vector.extract_strided_slice %165 {offsets = [0, 224], sizes = [8, 32], strides = [1, 1]} : vector<8x256xf32> to vector<8x32xf32>
    %179 = arith.mulf %176, %154 : vector<8x32xf32>
    %180 = arith.mulf %175, %177 : vector<8x32xf32>
    %181 = arith.addf %179, %180 : vector<8x32xf32>
    %182 = math.tanh %181 : vector<8x32xf32>
    %183 = arith.mulf %178, %182 : vector<8x32xf32>
    %184 = tpu.concatenate %174, %183 in 1 : vector<8x32xf32>, vector<8x32xf32> -> vector<8x64xf32>
    %185 = arith.truncf %184 : vector<8x64xf32> to vector<8x64xbf16>
    %cst_29 = arith.constant dense<0.000000e+00> : vector<8x256xf32>
    %186 = tpu.matmul %185, %8, %cst_29 {dimension_numbers = #tpu.dot_dimension_numbers<[1], [0], [0], [1], [0, 0, 1, 1], [], []>} : vector<8x64xbf16>, vector<64x256xbf16>, vector<8x256xf32> -> vector<8x256xf32>
    %c48 = arith.constant 48 : index
    %c0_30 = arith.constant 0 : index
    %187 = vector.load %arg9[%c48, %c0_30] : memref<64x256xf32, #tpu.memory_space<vmem>>, vector<8x256xf32>
    %188 = arith.addf %187, %186 : vector<8x256xf32>
    %189 = arith.mulf %188, %33 : vector<8x256xf32>
    %190 = math.tanh %189 : vector<8x256xf32>
    %191 = arith.mulf %190, %33 : vector<8x256xf32>
    %192 = arith.addf %191, %36 : vector<8x256xf32>
    %193 = vector.extract_strided_slice %192 {offsets = [0, 0], sizes = [8, 32], strides = [1, 1]} : vector<8x256xf32> to vector<8x32xf32>
    %194 = vector.extract_strided_slice %192 {offsets = [0, 32], sizes = [8, 32], strides = [1, 1]} : vector<8x256xf32> to vector<8x32xf32>
    %195 = vector.extract_strided_slice %192 {offsets = [0, 64], sizes = [8, 32], strides = [1, 1]} : vector<8x256xf32> to vector<8x32xf32>
    %196 = vector.extract_strided_slice %192 {offsets = [0, 96], sizes = [8, 32], strides = [1, 1]} : vector<8x256xf32> to vector<8x32xf32>
    %197 = arith.mulf %194, %172 : vector<8x32xf32>
    %198 = arith.mulf %193, %195 : vector<8x32xf32>
    %199 = arith.addf %197, %198 : vector<8x32xf32>
    %200 = math.tanh %199 : vector<8x32xf32>
    %201 = arith.mulf %196, %200 : vector<8x32xf32>
    %202 = vector.extract_strided_slice %192 {offsets = [0, 128], sizes = [8, 32], strides = [1, 1]} : vector<8x256xf32> to vector<8x32xf32>
    %203 = vector.extract_strided_slice %192 {offsets = [0, 160], sizes = [8, 32], strides = [1, 1]} : vector<8x256xf32> to vector<8x32xf32>
    %204 = vector.extract_strided_slice %192 {offsets = [0, 192], sizes = [8, 32], strides = [1, 1]} : vector<8x256xf32> to vector<8x32xf32>
    %205 = vector.extract_strided_slice %192 {offsets = [0, 224], sizes = [8, 32], strides = [1, 1]} : vector<8x256xf32> to vector<8x32xf32>
    %206 = arith.mulf %203, %181 : vector<8x32xf32>
    %207 = arith.mulf %202, %204 : vector<8x32xf32>
    %208 = arith.addf %206, %207 : vector<8x32xf32>
    %209 = math.tanh %208 : vector<8x32xf32>
    %210 = arith.mulf %205, %209 : vector<8x32xf32>
    %211 = tpu.concatenate %201, %210 in 1 : vector<8x32xf32>, vector<8x32xf32> -> vector<8x64xf32>
    %212 = arith.truncf %211 : vector<8x64xf32> to vector<8x64xbf16>
    %cst_31 = arith.constant dense<0.000000e+00> : vector<8x256xf32>
    %213 = tpu.matmul %212, %8, %cst_31 {dimension_numbers = #tpu.dot_dimension_numbers<[1], [0], [0], [1], [0, 0, 1, 1], [], []>} : vector<8x64xbf16>, vector<64x256xbf16>, vector<8x256xf32> -> vector<8x256xf32>
    %c56 = arith.constant 56 : index
    %c0_32 = arith.constant 0 : index
    %214 = vector.load %arg9[%c56, %c0_32] : memref<64x256xf32, #tpu.memory_space<vmem>>, vector<8x256xf32>
    %215 = arith.addf %214, %213 : vector<8x256xf32>
    %216 = arith.mulf %215, %33 : vector<8x256xf32>
    %217 = math.tanh %216 : vector<8x256xf32>
    %218 = arith.mulf %217, %33 : vector<8x256xf32>
    %219 = arith.addf %218, %36 : vector<8x256xf32>
    %220 = vector.extract_strided_slice %219 {offsets = [0, 0], sizes = [8, 32], strides = [1, 1]} : vector<8x256xf32> to vector<8x32xf32>
    %221 = vector.extract_strided_slice %219 {offsets = [0, 32], sizes = [8, 32], strides = [1, 1]} : vector<8x256xf32> to vector<8x32xf32>
    %222 = vector.extract_strided_slice %219 {offsets = [0, 64], sizes = [8, 32], strides = [1, 1]} : vector<8x256xf32> to vector<8x32xf32>
    %223 = vector.extract_strided_slice %219 {offsets = [0, 96], sizes = [8, 32], strides = [1, 1]} : vector<8x256xf32> to vector<8x32xf32>
    %224 = arith.mulf %221, %199 : vector<8x32xf32>
    %225 = arith.mulf %220, %222 : vector<8x32xf32>
    %226 = arith.addf %224, %225 : vector<8x32xf32>
    %227 = math.tanh %226 : vector<8x32xf32>
    %228 = arith.mulf %223, %227 : vector<8x32xf32>
    %229 = vector.extract_strided_slice %219 {offsets = [0, 128], sizes = [8, 32], strides = [1, 1]} : vector<8x256xf32> to vector<8x32xf32>
    %230 = vector.extract_strided_slice %219 {offsets = [0, 160], sizes = [8, 32], strides = [1, 1]} : vector<8x256xf32> to vector<8x32xf32>
    %231 = vector.extract_strided_slice %219 {offsets = [0, 192], sizes = [8, 32], strides = [1, 1]} : vector<8x256xf32> to vector<8x32xf32>
    %232 = vector.extract_strided_slice %219 {offsets = [0, 224], sizes = [8, 32], strides = [1, 1]} : vector<8x256xf32> to vector<8x32xf32>
    %233 = arith.mulf %230, %208 : vector<8x32xf32>
    %234 = arith.mulf %229, %231 : vector<8x32xf32>
    %235 = arith.addf %233, %234 : vector<8x32xf32>
    %236 = math.tanh %235 : vector<8x32xf32>
    %237 = arith.mulf %232, %236 : vector<8x32xf32>
    %238 = tpu.concatenate %228, %237 in 1 : vector<8x32xf32>, vector<8x32xf32> -> vector<8x64xf32>
    %239 = arith.truncf %238 : vector<8x64xf32> to vector<8x64xbf16>
    %cst_33 = arith.constant dense<0.000000e+00> : vector<8x256xf32>
    %240 = tpu.matmul %239, %8, %cst_33 {dimension_numbers = #tpu.dot_dimension_numbers<[1], [0], [0], [1], [0, 0, 1, 1], [], []>} : vector<8x64xbf16>, vector<64x256xbf16>, vector<8x256xf32> -> vector<8x256xf32>
    %c56_34 = arith.constant 56 : index
    %c0_35 = arith.constant 0 : index
    %241 = vector.load %arg9[%c56_34, %c0_35] : memref<64x256xf32, #tpu.memory_space<vmem>>, vector<8x256xf32>
    %242 = arith.addf %241, %240 : vector<8x256xf32>
    %243 = arith.mulf %242, %33 : vector<8x256xf32>
    %244 = math.tanh %243 : vector<8x256xf32>
    %245 = arith.mulf %244, %33 : vector<8x256xf32>
    %246 = arith.addf %245, %36 : vector<8x256xf32>
    %247 = vector.extract_strided_slice %246 {offsets = [0, 128], sizes = [8, 32], strides = [1, 1]} : vector<8x256xf32> to vector<8x32xf32>
    %248 = vector.extract_strided_slice %246 {offsets = [0, 160], sizes = [8, 32], strides = [1, 1]} : vector<8x256xf32> to vector<8x32xf32>
    %249 = vector.extract_strided_slice %246 {offsets = [0, 192], sizes = [8, 32], strides = [1, 1]} : vector<8x256xf32> to vector<8x32xf32>
    %250 = vector.extract_strided_slice %246 {offsets = [0, 224], sizes = [8, 32], strides = [1, 1]} : vector<8x256xf32> to vector<8x32xf32>
    %251 = arith.mulf %248, %235 : vector<8x32xf32>
    %252 = arith.mulf %247, %249 : vector<8x32xf32>
    %253 = arith.addf %251, %252 : vector<8x32xf32>
    %254 = math.tanh %253 : vector<8x32xf32>
    %255 = arith.mulf %250, %254 : vector<8x32xf32>
    %256 = tpu.concatenate %228, %255 in 0 : vector<8x32xf32>, vector<8x32xf32> -> vector<16x32xf32>
    %cst_36 = arith.constant 0.000000e+00 : f32
    %257 = vector.broadcast %cst_36 : f32 to vector<16x32xf32>
    %258 = arith.maximumf %256, %257 : vector<16x32xf32>
    %c0_37 = arith.constant 0 : index
    %c0_38 = arith.constant 0 : index
    %259 = vector.load %arg4[%c0_37, %c0_38] : memref<32x128xbf16, #tpu.memory_space<vmem>>, vector<32x128xbf16>
    %260 = arith.truncf %258 : vector<16x32xf32> to vector<16x32xbf16>
    %cst_39 = arith.constant dense<0.000000e+00> : vector<16x128xf32>
    %261 = tpu.matmul %260, %259, %cst_39 {dimension_numbers = #tpu.dot_dimension_numbers<[1], [0], [0], [1], [0, 0, 1, 1], [], []>} : vector<16x32xbf16>, vector<32x128xbf16>, vector<16x128xf32> -> vector<16x128xf32>
    %c0_40 = arith.constant 0 : index
    %c0_41 = arith.constant 0 : index
    %262 = vector.load %arg5[%c0_40, %c0_41] : memref<1x128xf32, #tpu.memory_space<vmem>>, vector<1x128xf32>
    %263 = vector.broadcast %262 : vector<1x128xf32> to vector<16x128xf32>
    %264 = arith.addf %261, %263 : vector<16x128xf32>
    %cst_42 = arith.constant 0.000000e+00 : f32
    %265 = vector.broadcast %cst_42 : f32 to vector<16x128xf32>
    %266 = arith.maximumf %264, %265 : vector<16x128xf32>
    %c0_43 = arith.constant 0 : index
    %c0_44 = arith.constant 0 : index
    %267 = vector.load %arg6[%c0_43, %c0_44] : memref<128x128xbf16, #tpu.memory_space<vmem>>, vector<128x128xbf16>
    %268 = arith.truncf %266 : vector<16x128xf32> to vector<16x128xbf16>
    %cst_45 = arith.constant dense<0.000000e+00> : vector<16x128xf32>
    %269 = tpu.matmul %268, %267, %cst_45 {dimension_numbers = #tpu.dot_dimension_numbers<[1], [0], [0], [1], [0, 0, 1, 1], [], []>} : vector<16x128xbf16>, vector<128x128xbf16>, vector<16x128xf32> -> vector<16x128xf32>
    %c0_46 = arith.constant 0 : index
    %c0_47 = arith.constant 0 : index
    %270 = vector.load %arg7[%c0_46, %c0_47] : memref<1x128xf32, #tpu.memory_space<vmem>>, vector<1x128xf32>
    %271 = vector.broadcast %270 : vector<1x128xf32> to vector<16x128xf32>
    %272 = arith.addf %269, %271 : vector<16x128xf32>
    %c0_48 = arith.constant 0 : index
    %c0_49 = arith.constant 0 : index
    %273 = vector.load %arg8[%c0_48, %c0_49] : memref<16x128xf32, #tpu.memory_space<vmem>>, vector<16x128xf32>
    tpu.vector_store %arg8[%c0_48, %c0_49], %272 {strides = array<i32>} : memref<16x128xf32, #tpu.memory_space<vmem>>, vector<16x128xf32>,
    return
  }
}

</mosaic_0001>

<llo_original>
// kernel: lstm1_forward.1
$region0: #{lstm1_forward.1}
  #allocation0 [shape = 'u32[]', space=smem, size = 0x4, offset = 0x4, fixed_abs, tag = 'smem constant byte address 0x4 - core index']
  #allocation1 [shape = 'u32[144,128]{1,0:T(1,128)}', space=vmem, size = 0x12000, scoped, tag = 'internal scratch']
  #allocation2 [shape = 'f32[64,256]{1,0:T(8,128)}', space=vmem, size = 0x10000, scoped, tag = 'scratch operand']
  %s0 = inlined_call_operand.vmem [shape: f32[64,16], index: 0, kind: input, shape index: {}]
  %s1 = inlined_call_operand.vmem [shape: bf16[16,256], index: 1, kind: input, shape index: {}]
  %s2 = inlined_call_operand.vmem [shape: f32[1,256], index: 2, kind: input, shape index: {}]
  %s3 = inlined_call_operand.vmem [shape: bf16[64,256], index: 3, kind: input, shape index: {}]
  %s4 = inlined_call_operand.vmem [shape: bf16[32,128], index: 4, kind: input, shape index: {}]
  %s5 = inlined_call_operand.vmem [shape: f32[1,128], index: 5, kind: input, shape index: {}]
  %s6 = inlined_call_operand.vmem [shape: bf16[128,128], index: 6, kind: input, shape index: {}]
  %s7 = inlined_call_operand.vmem [shape: f32[1,128], index: 7, kind: input, shape index: {}]
  %s8 = inlined_call_operand.vmem [shape: f32[16,128], index: 8, kind: output, shape index: {}]
  %s9 = sld [smem:[#allocation0]]
  $region42: #{lstm1_forward.1} parent=0
    _
  %s11 = ssub.s32 1, %s9
  %s12 = scalar_select 0, %s11, %s9
  // Predicated region
  $region2: #{lstm1_forward.1} parent=0 // pred_check
    _
  $region3: #{lstm1_forward.1} parent=0 // pred_check_branch
    %14 = sbr.rel (0) target = $region5
  $region4: #{lstm1_forward.1} parent=0 // pred_region
    _
  $region5: #{lstm1_forward.1} parent=0 // pred_fallthru
    _
  // Predicated region
  $region6: #{lstm1_forward.1} parent=0 // pred_check
    _
  $region7: #{lstm1_forward.1} parent=0 // pred_check_branch
    %16 = sbr.rel (0) target = $region9
  $region8: #{lstm1_forward.1} parent=0 // pred_region
    _
  $region9: #{lstm1_forward.1} parent=0 // pred_fallthru
    _
  // Predicated region
  $region10: #{lstm1_forward.1} parent=0 // pred_check
    _
  $region11: #{lstm1_forward.1} parent=0 // pred_check_branch
    %18 = sbr.rel (0) target = $region13
  $region12: #{lstm1_forward.1} parent=0 // pred_region
    _
  $region13: #{lstm1_forward.1} parent=0 // pred_fallthru
    _
  // Predicated region
  $region14: #{lstm1_forward.1} parent=0 // pred_check
    _
  $region15: #{lstm1_forward.1} parent=0 // pred_check_branch
    %20 = sbr.rel (0) target = $region17
  $region16: #{lstm1_forward.1} parent=0 // pred_region
    _
  $region17: #{lstm1_forward.1} parent=0 // pred_fallthru
    _
  // Predicated region
  $region18: #{lstm1_forward.1} parent=0 // pred_check
    _
  $region19: #{lstm1_forward.1} parent=0 // pred_check_branch
    %22 = sbr.rel (0) target = $region21
  $region20: #{lstm1_forward.1} parent=0 // pred_region
    _
  $region21: #{lstm1_forward.1} parent=0 // pred_fallthru
    _
  // Predicated region
  $region22: #{lstm1_forward.1} parent=0 // pred_check
    _
  $region23: #{lstm1_forward.1} parent=0 // pred_check_branch
    %24 = sbr.rel (0) target = $region25
  $region24: #{lstm1_forward.1} parent=0 // pred_region
    _
  $region25: #{lstm1_forward.1} parent=0 // pred_fallthru
    _
  // Predicated region
  $region26: #{lstm1_forward.1} parent=0 // pred_check
    _
  $region27: #{lstm1_forward.1} parent=0 // pred_check_branch
    %26 = sbr.rel (0) target = $region29
  $region28: #{lstm1_forward.1} parent=0 // pred_region
    _
  $region29: #{lstm1_forward.1} parent=0 // pred_fallthru
    _
  // Predicated region
  $region30: #{lstm1_forward.1} parent=0 // pred_check
    _
  $region31: #{lstm1_forward.1} parent=0 // pred_check_branch
    %28 = sbr.rel (0) target = $region33
  $region32: #{lstm1_forward.1} parent=0 // pred_region
    _
  $region33: #{lstm1_forward.1} parent=0 // pred_fallthru
    _
  %v30 = vld [vmem:[%s0] sm:$0xff]
  %v31 = vld [vmem:[%s0 + $0x8] sm:$0xff]
  %v32 = vld [vmem:[%s0 + $0x10] sm:$0xff]
  %v33 = vld [vmem:[%s0 + $0x18] sm:$0xff]
  %v34 = vld [vmem:[%s0 + $0x20] sm:$0xff]
  %v35 = vld [vmem:[%s0 + $0x28] sm:$0xff]
  %v36 = vld [vmem:[%s0 + $0x30] sm:$0xff]
  %v37 = vld [vmem:[%s0 + $0x38] sm:$0xff]
  %v38 = vld [vmem:[%s1] sm:$0xff]
  %v39 = vld [vmem:[%s1 + $0x8] sm:$0xff]
  %v40 = vpack.c.bf16 %v31, %v30
  %v41 = vpack.c.bf16 %v33, %v32
  %v42 = vpack.c.bf16 %v35, %v34
  %v43 = vpack.c.bf16 %v37, %v36
  %v44 = vld [vmem:[%s2] sm:$0x3]
  %v46 = vlaneseq
  %v47 = vshrl.u32 %v46, 7
  %v48 = vsub.s32 0, %v47
  %v49 = vrot.slane %v44, %v48
  %v50 = vlaneseq
  %v51 = vshrl.u32 %v50, 7
  %v52 = vsub.s32 1, %v51
  %v53 = vrot.slane %v44, %v52
  %v58 = vunpack.c.l.b16 %v38
  %v59 = vunpack.c.h.b16 %v38
  %v60 = vunpack.c.l.b16 %v39
  %v61 = vunpack.c.h.b16 %v39
  %v62 = vpack.c.b16 %v60, %v58
  %v63 = vpack.c.b16 %v61, %v59
  %vm66 = vcmask 130048
  %v68 = vsel %vm66, %v40, 0
  %v71 = vsel %vm66, %v41, 0
  %v74 = vsel %vm66, %v42, 0
  %v77 = vsel %vm66, %v43, 0
  %79 = vmatprep.subr.bf16.mxu0 %v63
  %80 = vmatpush1.bf16.msra.mxu0 %v62
  %81 = vmatprep.subr.bf16.mxu0 0
  %82 = vmatpush1.bf16.msra.mxu0 0
  %83 = vmatprep.subr.bf16.mxu0 0
  %84 = vmatpush1.bf16.msra.mxu0 0
  %85 = vmatprep.subr.bf16.mxu0 0
  %86 = vmatpush1.bf16.msra.mxu0 0
  %87 = vmatprep.subr.bf16.mxu0 0
  %88 = vmatpush1.bf16.msra.mxu0 0
  %89 = vmatprep.subr.bf16.mxu0 0
  %90 = vmatpush1.bf16.msra.mxu0 0
  %91 = vmatprep.subr.bf16.mxu0 0
  %92 = vmatpush1.bf16.msra.mxu0 0
  %93 = vmatprep.subr.bf16.mxu0 0
  %94 = vmatpush1.bf16.msra.mxu0 0
  %95 = vmatprep.subr.bf16.mxu0 0
  %96 = vmatpush1.bf16.msra.mxu0 0
  %97 = vmatprep.subr.bf16.mxu0 0
  %98 = vmatpush1.bf16.msra.mxu0 0
  %99 = vmatprep.subr.bf16.mxu0 0
  %100 = vmatpush1.bf16.msra.mxu0 0
  %101 = vmatprep.subr.bf16.mxu0 0
  %102 = vmatpush1.bf16.msra.mxu0 0
  %103 = vmatprep.subr.bf16.mxu0 0
  %104 = vmatpush1.bf16.msra.mxu0 0
  %105 = vmatprep.subr.bf16.mxu0 0
  %106 = vmatpush1.bf16.msra.mxu0 0
  %107 = vmatprep.subr.bf16.mxu0 0
  %108 = vmatpush1.bf16.msra.mxu0 0
  %109 = vmatprep.subr.bf16.mxu0 0
  %110 = vmatpush1.bf16.msra.mxu0 0
  %111 = vmatprep.mubr.bf16.mxu0 0
  %112 = vmatmul.mubr.bf16.gmra.mrb[0].mxu0 %v68
  %v113 = vpop.f32.mrb[0].mxu0
  %v114 = vadd.f32 %v49, %v113
  %v115 = vpop.f32.mrb[0].mxu0
  %v116 = vadd.f32 %v53, %v115
  %v117 = vpop.f32.mrb[0].mxu0
  %v118 = vadd.f32 %v49, %v117
  %v119 = vpop.f32.mrb[0].mxu0
  %v120 = vadd.f32 %v53, %v119
  %121 = vmatprep.mubr.bf16.mxu0 0
  %122 = vmatmul.mubr.bf16.gmra.mrb[0].mxu0 %v71
  %v123 = vpop.f32.mrb[0].mxu0
  %v124 = vadd.f32 %v49, %v123
  %v125 = vpop.f32.mrb[0].mxu0
  %v126 = vadd.f32 %v53, %v125
  %v127 = vpop.f32.mrb[0].mxu0
  %v128 = vadd.f32 %v49, %v127
  %v129 = vpop.f32.mrb[0].mxu0
  %v130 = vadd.f32 %v53, %v129
  %131 = vmatprep.mubr.bf16.mxu0 0
  %132 = vmatmul.mubr.bf16.gmra.mrb[0].mxu0 %v74
  %v133 = vpop.f32.mrb[0].mxu0
  %v134 = vadd.f32 %v49, %v133
  %v135 = vpop.f32.mrb[0].mxu0
  %v136 = vadd.f32 %v53, %v135
  %v137 = vpop.f32.mrb[0].mxu0
  %v138 = vadd.f32 %v49, %v137
  %v139 = vpop.f32.mrb[0].mxu0
  %v140 = vadd.f32 %v53, %v139
  %141 = vmatprep.mubr.bf16.mxu0 0
  %142 = vmatmul.mubr.bf16.gmra.mrb[0].mxu0 %v77
  %v143 = vpop.f32.mrb[0].mxu0
  %v144 = vadd.f32 %v49, %v143
  %v145 = vpop.f32.mrb[0].mxu0
  %v146 = vadd.f32 %v53, %v145
  %v147 = vpop.f32.mrb[0].mxu0
  %v148 = vadd.f32 %v49, %v147
  %v149 = vpop.f32.mrb[0].mxu0
  %v150 = vadd.f32 %v53, %v149
  %151 = vdwg.mxu0
  %152 = vst [vmem:[#allocation2] sm:$0xff] %v114
  %153 = vst [vmem:[#allocation2 + $0x8] sm:$0xff] %v116
  %154 = vst [vmem:[#allocation2 + $0x10] sm:$0xff] %v118
  %155 = vst [vmem:[#allocation2 + $0x18] sm:$0xff] %v120
  %156 = vst [vmem:[#allocation2 + $0x20] sm:$0xff] %v124
  %157 = vst [vmem:[#allocation2 + $0x28] sm:$0xff] %v126
  %158 = vst [vmem:[#allocation2 + $0x30] sm:$0xff] %v128
  %159 = vst [vmem:[#allocation2 + $0x38] sm:$0xff] %v130
  %160 = vst [vmem:[#allocation2 + $0x40] sm:$0xff] %v134
  %161 = vst [vmem:[#allocation2 + $0x48] sm:$0xff] %v136
  %162 = vst [vmem:[#allocation2 + $0x50] sm:$0xff] %v138
  %163 = vst [vmem:[#allocation2 + $0x58] sm:$0xff] %v140
  %164 = vst [vmem:[#allocation2 + $0x60] sm:$0xff] %v144
  %165 = vst [vmem:[#allocation2 + $0x68] sm:$0xff] %v146
  %166 = vst [vmem:[#allocation2 + $0x70] sm:$0xff] %v148
  %167 = vst [vmem:[#allocation2 + $0x78] sm:$0xff] %v150
  %v168 = vld [vmem:[%s3] sm:$0xff]
  %v169 = vld [vmem:[%s3 + $0x8] sm:$0xff]
  %v170 = vld [vmem:[%s3 + $0x10] sm:$0xff]
  %v171 = vld [vmem:[%s3 + $0x18] sm:$0xff]
  %v172 = vld [vmem:[%s3 + $0x20] sm:$0xff]
  %v173 = vld [vmem:[%s3 + $0x28] sm:$0xff]
  %v174 = vld [vmem:[%s3 + $0x30] sm:$0xff]
  %v175 = vld [vmem:[%s3 + $0x38] sm:$0xff]
  %v176 = vlaneseq
  %v177 = vand.u32 %v176, 127
  %v178 = vadd.s32 %v177, 128
  %vm179 = vcmp.lt.s32.totalorder %v177, 0
  %v180 = vsub.s32 0, %v177
  %v181 = vsel %vm179, %v180, %v177
  %v182 = vshrl.u32 %v181, 7
  %v183 = vand.u32 %v181, 127
  %v184 = vsub.s32 0, %v183
  %v185 = vsel %vm179, %v184, %v183
  %vm186 = vcmp.lt.s32.totalorder %v178, 0
  %v187 = vsub.s32 0, %v178
  %v188 = vsel %vm186, %v187, %v178
  %v189 = vshrl.u32 %v188, 7
  %v190 = vand.u32 %v188, 127
  %v191 = vsub.s32 0, %v190
  %v192 = vsel %vm186, %v191, %v190
  %vm193 = vcmp.ne.s32.totalorder %v185, 0
  %vm194 = vcmp.ne.s32.totalorder %v192, 0
  %vm195 = vcmp.lt.s32.totalorder %v185, 0
  %vm196 = vcmp.lt.s32.totalorder %v192, 0
  %vm197 = vmand %vm195, %vm193
  %vm198 = vmand %vm196, %vm194
  %v199 = vadd.s32 %v185, 128
  %v200 = vadd.s32 %v192, 128
  %v201 = vsel %vm197, %v199, %v185
  %v202 = vsel %vm198, %v200, %v192
  %vm203 = vcmp.ge.s32.totalorder %v201, 64
  %vm204 = vcmp.ge.s32.totalorder %v202, 64
  %vm205 = vcmp.lt.s32.totalorder %v201, 96
  %vm206 = vcmp.lt.s32.totalorder %v202, 96
  %vm207 = vmand %vm203, %vm205
  %vm208 = vmand %vm204, %vm206
  %v209 = vsel %vm207, 1.0, 0.5
  %v210 = vsel %vm208, 1.0, 0.5
  %v211 = vsel %vm207, 0.0, 0.5
  %v212 = vsel %vm208, 0.0, 0.5
  %v213 = vld [vmem:[#allocation2] sm:$0xff]
  %v214 = vmul.f32 %v213, %v209
  %v215 = vtanh.pop %v214
  %v216 = vmul.f32 %v215, %v209
  %v217 = vadd.f32 %v216, %v211
  %219 = vrot.lane.b32.xlu0 %v217, 64
  %v220 = vpop.permute.xlu0 %219
  %v222 = vmul.f32 %v217, %v220
  %v223 = vtanh.pop %v222
  %225 = vrot.lane.b32.xlu0 %v223, 96
  %v226 = vpop.permute.xlu0 %225
  %v228 = vmul.f32 %v217, %v226
  %230 = vrot.lane.b32.xlu0 %v228, 32
  %v231 = vpop.permute.xlu0 %230
  %vm233 = vcmask 261120
  %v234 = vsel %vm233, %v231, 0.0
  %v235 = vpack.c.bf16 %v234, %v234
  %v244 = vunpack.c.l.b16 %v168
  %v245 = vunpack.c.h.b16 %v168
  %v246 = vunpack.c.l.b16 %v169
  %v247 = vunpack.c.h.b16 %v169
  %v248 = vunpack.c.l.b16 %v170
  %v249 = vunpack.c.h.b16 %v170
  %v250 = vunpack.c.l.b16 %v171
  %v251 = vunpack.c.h.b16 %v171
  %v252 = vunpack.c.l.b16 %v172
  %v253 = vunpack.c.h.b16 %v172
  %v254 = vunpack.c.l.b16 %v173
  %v255 = vunpack.c.h.b16 %v173
  %v256 = vunpack.c.l.b16 %v174
  %v257 = vunpack.c.h.b16 %v174
  %v258 = vunpack.c.l.b16 %v175
  %v259 = vunpack.c.h.b16 %v175
  %v260 = vpack.c.b16 %v246, %v244
  %v261 = vpack.c.b16 %v247, %v245
  %v262 = vpack.c.b16 %v250, %v248
  %v263 = vpack.c.b16 %v251, %v249
  %v264 = vpack.c.b16 %v254, %v252
  %v265 = vpack.c.b16 %v255, %v253
  %v266 = vpack.c.b16 %v258, %v256
  %v267 = vpack.c.b16 %v259, %v257
  %vm276 = vcmask 523264
  %v278 = vsel %vm276, %v235, 0
  %280 = vmatprep.subr.bf16.mxu0 %v261
  %281 = vmatpush1.bf16.msra.mxu0 %v260
  %282 = vmatprep.subr.bf16.mxu0 %v263
  %283 = vmatpush1.bf16.msra.mxu0 %v262
  %284 = vmatprep.subr.bf16.mxu0 %v265
  %285 = vmatpush1.bf16.msra.mxu0 %v264
  %286 = vmatprep.subr.bf16.mxu0 %v267
  %287 = vmatpush1.bf16.msra.mxu0 %v266
  %288 = vmatprep.subr.bf16.mxu0 0
  %289 = vmatpush1.bf16.msra.mxu0 0
  %290 = vmatprep.subr.bf16.mxu0 0
  %291 = vmatpush1.bf16.msra.mxu0 0
  %292 = vmatprep.subr.bf16.mxu0 0
  %293 = vmatpush1.bf16.msra.mxu0 0
  %294 = vmatprep.subr.bf16.mxu0 0
  %295 = vmatpush1.bf16.msra.mxu0 0
  %296 = vmatprep.subr.bf16.mxu0 0
  %297 = vmatpush1.bf16.msra.mxu0 0
  %298 = vmatprep.subr.bf16.mxu0 0
  %299 = vmatpush1.bf16.msra.mxu0 0
  %300 = vmatprep.subr.bf16.mxu0 0
  %301 = vmatpush1.bf16.msra.mxu0 0
  %302 = vmatprep.subr.bf16.mxu0 0
  %303 = vmatpush1.bf16.msra.mxu0 0
  %304 = vmatprep.subr.bf16.mxu0 0
  %305 = vmatpush1.bf16.msra.mxu0 0
  %306 = vmatprep.subr.bf16.mxu0 0
  %307 = vmatpush1.bf16.msra.mxu0 0
  %308 = vmatprep.subr.bf16.mxu0 0
  %309 = vmatpush1.bf16.msra.mxu0 0
  %310 = vmatprep.subr.bf16.mxu0 0
  %311 = vmatpush1.bf16.msra.mxu0 0
  %312 = vmatprep.mubr.bf16.mxu0 0
  %313 = vmatmul.mubr.bf16.gmra.mrb[0].mxu0 %v278
  %v314 = vpop.f32.mrb[0].mxu0
  %v315 = vadd.f32 0.0, %v314
  %v316 = vpop.f32.mrb[0].mxu0
  %v317 = vadd.f32 0.0, %v316
  %v318 = vpop.f32.mrb[0].mxu0
  %v319 = vpop.f32.mrb[0].mxu0
  %320 = vdwg.mxu0
  %v321 = vld [vmem:[#allocation2 + $0x10] sm:$0xff]
  %v322 = vld [vmem:[#allocation2 + $0x18] sm:$0xff]
  %v323 = vadd.f32 %v321, %v315
  %v324 = vadd.f32 %v322, %v317
  %v325 = vmul.f32 %v323, %v209
  %v326 = vmul.f32 %v324, %v210
  %v327 = vtanh.pop %v325
  %v328 = vtanh.pop %v326
  %v329 = vmul.f32 %v327, %v209
  %v330 = vmul.f32 %v328, %v210
  %v331 = vadd.f32 %v329, %v211
  %v332 = vadd.f32 %v330, %v212
  %334 = vrot.lane.b32.xlu0 %v222, 32
  %v335 = vpop.permute.xlu0 %334
  %v337 = vmul.f32 %v331, %v335
  %339 = vrot.lane.b32.xlu0 %v331, 64
  %v340 = vpop.permute.xlu0 %339
  %v342 = vmul.f32 %v331, %v340
  %344 = vrot.lane.b32.xlu0 %v342, 32
  %v345 = vpop.permute.xlu0 %344
  %v347 = vadd.f32 %v337, %v345
  %v348 = vtanh.pop %v347
  %350 = vrot.lane.b32.xlu0 %v348, 64
  %v351 = vpop.permute.xlu0 %350
  %v353 = vmul.f32 %v331, %v351
  %355 = vrot.lane.b32.xlu0 %v332, 64
  %v356 = vpop.permute.xlu0 %355
  %v358 = vmul.f32 %v332, %v356
  %v359 = vtanh.pop %v358
  %361 = vrot.lane.b32.xlu0 %v359, 96
  %v362 = vpop.permute.xlu0 %361
  %v364 = vmul.f32 %v332, %v362
  %366 = vrot.lane.b32.xlu0 %v353, 32
  %v367 = vpop.permute.xlu0 %366
  %370 = vrot.lane.b32.xlu0 %v364, 64
  %v371 = vpop.permute.xlu0 %370
  %v373 = vsel %vm233, %v367, %v371
  %v374 = vpack.c.bf16 %v373, %v373
  %v376 = vsel %vm276, %v374, 0
  %378 = vmatprep.subr.bf16.mxu0 %v261
  %379 = vmatpush1.bf16.msra.mxu0 %v260
  %380 = vmatprep.subr.bf16.mxu0 %v263
  %381 = vmatpush1.bf16.msra.mxu0 %v262
  %382 = vmatprep.subr.bf16.mxu0 %v265
  %383 = vmatpush1.bf16.msra.mxu0 %v264
  %384 = vmatprep.subr.bf16.mxu0 %v267
  %385 = vmatpush1.bf16.msra.mxu0 %v266
  %386 = vmatprep.subr.bf16.mxu0 0
  %387 = vmatpush1.bf16.msra.mxu0 0
  %388 = vmatprep.subr.bf16.mxu0 0
  %389 = vmatpush1.bf16.msra.mxu0 0
  %390 = vmatprep.subr.bf16.mxu0 0
  %391 = vmatpush1.bf16.msra.mxu0 0
  %392 = vmatprep.subr.bf16.mxu0 0
  %393 = vmatpush1.bf16.msra.mxu0 0
  %394 = vmatprep.subr.bf16.mxu0 0
  %395 = vmatpush1.bf16.msra.mxu0 0
  %396 = vmatprep.subr.bf16.mxu0 0
  %397 = vmatpush1.bf16.msra.mxu0 0
  %398 = vmatprep.subr.bf16.mxu0 0
  %399 = vmatpush1.bf16.msra.mxu0 0
  %400 = vmatprep.subr.bf16.mxu0 0
  %401 = vmatpush1.bf16.msra.mxu0 0
  %402 = vmatprep.subr.bf16.mxu0 0
  %403 = vmatpush1.bf16.msra.mxu0 0
  %404 = vmatprep.subr.bf16.mxu0 0
  %405 = vmatpush1.bf16.msra.mxu0 0
  %406 = vmatprep.subr.bf16.mxu0 0
  %407 = vmatpush1.bf16.msra.mxu0 0
  %408 = vmatprep.subr.bf16.mxu0 0
  %409 = vmatpush1.bf16.msra.mxu0 0
  %410 = vmatprep.mubr.bf16.mxu0 0
  %411 = vmatmul.mubr.bf16.gmra.mrb[0].mxu0 %v376
  %v412 = vpop.f32.mrb[0].mxu0
  %v413 = vadd.f32 0.0, %v412
  %v414 = vpop.f32.mrb[0].mxu0
  %v415 = vadd.f32 0.0, %v414
  %v416 = vpop.f32.mrb[0].mxu0
  %v417 = vpop.f32.mrb[0].mxu0
  %418 = vdwg.mxu0
  %v419 = vld [vmem:[#allocation2 + $0x20] sm:$0xff]
  %v420 = vld [vmem:[#allocation2 + $0x28] sm:$0xff]
  %v421 = vadd.f32 %v419, %v413
  %v422 = vadd.f32 %v420, %v415
  %v423 = vmul.f32 %v421, %v209
  %v424 = vmul.f32 %v422, %v210
  %v425 = vtanh.pop %v423
  %v426 = vtanh.pop %v424
  %v427 = vmul.f32 %v425, %v209
  %v428 = vmul.f32 %v426, %v210
  %v429 = vadd.f32 %v427, %v211
  %v430 = vadd.f32 %v428, %v212
  %v431 = vmul.f32 %v429, %v347
  %433 = vrot.lane.b32.xlu0 %v429, 64
  %v434 = vpop.permute.xlu0 %433
  %v436 = vmul.f32 %v429, %v434
  %438 = vrot.lane.b32.xlu0 %v436, 32
  %v439 = vpop.permute.xlu0 %438
  %v441 = vadd.f32 %v431, %v439
  %v442 = vtanh.pop %v441
  %444 = vrot.lane.b32.xlu0 %v442, 64
  %v445 = vpop.permute.xlu0 %444
  %v447 = vmul.f32 %v429, %v445
  %449 = vrot.lane.b32.xlu0 %v358, 32
  %v450 = vpop.permute.xlu0 %449
  %v452 = vmul.f32 %v430, %v450
  %454 = vrot.lane.b32.xlu0 %v430, 64
  %v455 = vpop.permute.xlu0 %454
  %v457 = vmul.f32 %v430, %v455
  %459 = vrot.lane.b32.xlu0 %v457, 32
  %v460 = vpop.permute.xlu0 %459
  %v462 = vadd.f32 %v452, %v460
  %v463 = vtanh.pop %v462
  %465 = vrot.lane.b32.xlu0 %v463, 64
  %v466 = vpop.permute.xlu0 %465
  %v468 = vmul.f32 %v430, %v466
  %470 = vrot.lane.b32.xlu0 %v447, 32
  %v471 = vpop.permute.xlu0 %470
  %474 = vrot.lane.b32.xlu0 %v468, 64
  %v475 = vpop.permute.xlu0 %474
  %v477 = vsel %vm233, %v471, %v475
  %v478 = vpack.c.bf16 %v477, %v477
  %v480 = vsel %vm276, %v478, 0
  %482 = vmatprep.subr.bf16.mxu0 %v261
  %483 = vmatpush1.bf16.msra.mxu0 %v260
  %484 = vmatprep.subr.bf16.mxu0 %v263
  %485 = vmatpush1.bf16.msra.mxu0 %v262
  %486 = vmatprep.subr.bf16.mxu0 %v265
  %487 = vmatpush1.bf16.msra.mxu0 %v264
  %488 = vmatprep.subr.bf16.mxu0 %v267
  %489 = vmatpush1.bf16.msra.mxu0 %v266
  %490 = vmatprep.subr.bf16.mxu0 0
  %491 = vmatpush1.bf16.msra.mxu0 0
  %492 = vmatprep.subr.bf16.mxu0 0
  %493 = vmatpush1.bf16.msra.mxu0 0
  %494 = vmatprep.subr.bf16.mxu0 0
  %495 = vmatpush1.bf16.msra.mxu0 0
  %496 = vmatprep.subr.bf16.mxu0 0
  %497 = vmatpush1.bf16.msra.mxu0 0
  %498 = vmatprep.subr.bf16.mxu0 0
  %499 = vmatpush1.bf16.msra.mxu0 0
  %500 = vmatprep.subr.bf16.mxu0 0
  %501 = vmatpush1.bf16.msra.mxu0 0
  %502 = vmatprep.subr.bf16.mxu0 0
  %503 = vmatpush1.bf16.msra.mxu0 0
  %504 = vmatprep.subr.bf16.mxu0 0
  %505 = vmatpush1.bf16.msra.mxu0 0
  %506 = vmatprep.subr.bf16.mxu0 0
  %507 = vmatpush1.bf16.msra.mxu0 0
  %508 = vmatprep.subr.bf16.mxu0 0
  %509 = vmatpush1.bf16.msra.mxu0 0
  %510 = vmatprep.subr.bf16.mxu0 0
  %511 = vmatpush1.bf16.msra.mxu0 0
  %512 = vmatprep.subr.bf16.mxu0 0
  %513 = vmatpush1.bf16.msra.mxu0 0
  %514 = vmatprep.mubr.bf16.mxu0 0
  %515 = vmatmul.mubr.bf16.gmra.mrb[0].mxu0 %v480
  %v516 = vpop.f32.mrb[0].mxu0
  %v517 = vadd.f32 0.0, %v516
  %v518 = vpop.f32.mrb[0].mxu0
  %v519 = vadd.f32 0.0, %v518
  %v520 = vpop.f32.mrb[0].mxu0
  %v521 = vpop.f32.mrb[0].mxu0
  %522 = vdwg.mxu0
  %v523 = vld [vmem:[#allocation2 + $0x30] sm:$0xff]
  %v524 = vld [vmem:[#allocation2 + $0x38] sm:$0xff]
  %v525 = vadd.f32 %v523, %v517
  %v526 = vadd.f32 %v524, %v519
  %v527 = vmul.f32 %v525, %v209
  %v528 = vmul.f32 %v526, %v210
  %v529 = vtanh.pop %v527
  %v530 = vtanh.pop %v528
  %v531 = vmul.f32 %v529, %v209
  %v532 = vmul.f32 %v530, %v210
  %v533 = vadd.f32 %v531, %v211
  %v534 = vadd.f32 %v532, %v212
  %v535 = vmul.f32 %v533, %v441
  %537 = vrot.lane.b32.xlu0 %v533, 64
  %v538 = vpop.permute.xlu0 %537
  %v540 = vmul.f32 %v533, %v538
  %542 = vrot.lane.b32.xlu0 %v540, 32
  %v543 = vpop.permute.xlu0 %542
  %v545 = vadd.f32 %v535, %v543
  %v546 = vtanh.pop %v545
  %548 = vrot.lane.b32.xlu0 %v546, 64
  %v549 = vpop.permute.xlu0 %548
  %v551 = vmul.f32 %v533, %v549
  %v552 = vmul.f32 %v534, %v462
  %554 = vrot.lane.b32.xlu0 %v534, 64
  %v555 = vpop.permute.xlu0 %554
  %v557 = vmul.f32 %v534, %v555
  %559 = vrot.lane.b32.xlu0 %v557, 32
  %v560 = vpop.permute.xlu0 %559
  %v562 = vadd.f32 %v552, %v560
  %v563 = vtanh.pop %v562
  %565 = vrot.lane.b32.xlu0 %v563, 64
  %v566 = vpop.permute.xlu0 %565
  %v568 = vmul.f32 %v534, %v566
  %570 = vrot.lane.b32.xlu0 %v551, 32
  %v571 = vpop.permute.xlu0 %570
  %574 = vrot.lane.b32.xlu0 %v568, 64
  %v575 = vpop.permute.xlu0 %574
  %v577 = vsel %vm233, %v571, %v575
  %v578 = vpack.c.bf16 %v577, %v577
  %v580 = vsel %vm276, %v578, 0
  %582 = vmatprep.subr.bf16.mxu0 %v261
  %583 = vmatpush1.bf16.msra.mxu0 %v260
  %584 = vmatprep.subr.bf16.mxu0 %v263
  %585 = vmatpush1.bf16.msra.mxu0 %v262
  %586 = vmatprep.subr.bf16.mxu0 %v265
  %587 = vmatpush1.bf16.msra.mxu0 %v264
  %588 = vmatprep.subr.bf16.mxu0 %v267
  %589 = vmatpush1.bf16.msra.mxu0 %v266
  %590 = vmatprep.subr.bf16.mxu0 0
  %591 = vmatpush1.bf16.msra.mxu0 0
  %592 = vmatprep.subr.bf16.mxu0 0
  %593 = vmatpush1.bf16.msra.mxu0 0
  %594 = vmatprep.subr.bf16.mxu0 0
  %595 = vmatpush1.bf16.msra.mxu0 0
  %596 = vmatprep.subr.bf16.mxu0 0
  %597 = vmatpush1.bf16.msra.mxu0 0
  %598 = vmatprep.subr.bf16.mxu0 0
  %599 = vmatpush1.bf16.msra.mxu0 0
  %600 = vmatprep.subr.bf16.mxu0 0
  %601 = vmatpush1.bf16.msra.mxu0 0
  %602 = vmatprep.subr.bf16.mxu0 0
  %603 = vmatpush1.bf16.msra.mxu0 0
  %604 = vmatprep.subr.bf16.mxu0 0
  %605 = vmatpush1.bf16.msra.mxu0 0
  %606 = vmatprep.subr.bf16.mxu0 0
  %607 = vmatpush1.bf16.msra.mxu0 0
  %608 = vmatprep.subr.bf16.mxu0 0
  %609 = vmatpush1.bf16.msra.mxu0 0
  %610 = vmatprep.subr.bf16.mxu0 0
  %611 = vmatpush1.bf16.msra.mxu0 0
  %612 = vmatprep.subr.bf16.mxu0 0
  %613 = vmatpush1.bf16.msra.mxu0 0
  %614 = vmatprep.mubr.bf16.mxu0 0
  %615 = vmatmul.mubr.bf16.gmra.mrb[0].mxu0 %v580
  %v616 = vpop.f32.mrb[0].mxu0
  %v617 = vadd.f32 0.0, %v616
  %v618 = vpop.f32.mrb[0].mxu0
  %v619 = vadd.f32 0.0, %v618
  %v620 = vpop.f32.mrb[0].mxu0
  %v621 = vpop.f32.mrb[0].mxu0
  %622 = vdwg.mxu0
  %v623 = vld [vmem:[#allocation2 + $0x40] sm:$0xff]
  %v624 = vld [vmem:[#allocation2 + $0x48] sm:$0xff]
  %v625 = vadd.f32 %v623, %v617
  %v626 = vadd.f32 %v624, %v619
  %v627 = vmul.f32 %v625, %v209
  %v628 = vmul.f32 %v626, %v210
  %v629 = vtanh.pop %v627
  %v630 = vtanh.pop %v628
  %v631 = vmul.f32 %v629, %v209
  %v632 = vmul.f32 %v630, %v210
  %v633 = vadd.f32 %v631, %v211
  %v634 = vadd.f32 %v632, %v212
  %v635 = vmul.f32 %v633, %v545
  %637 = vrot.lane.b32.xlu0 %v633, 64
  %v638 = vpop.permute.xlu0 %637
  %v640 = vmul.f32 %v633, %v638
  %642 = vrot.lane.b32.xlu0 %v640, 32
  %v643 = vpop.permute.xlu0 %642
  %v645 = vadd.f32 %v635, %v643
  %v646 = vtanh.pop %v645
  %648 = vrot.lane.b32.xlu0 %v646, 64
  %v649 = vpop.permute.xlu0 %648
  %v651 = vmul.f32 %v633, %v649
  %v652 = vmul.f32 %v634, %v562
  %654 = vrot.lane.b32.xlu0 %v634, 64
  %v655 = vpop.permute.xlu0 %654
  %v657 = vmul.f32 %v634, %v655
  %659 = vrot.lane.b32.xlu0 %v657, 32
  %v660 = vpop.permute.xlu0 %659
  %v662 = vadd.f32 %v652, %v660
  %v663 = vtanh.pop %v662
  %665 = vrot.lane.b32.xlu0 %v663, 64
  %v666 = vpop.permute.xlu0 %665
  %v668 = vmul.f32 %v634, %v666
  %670 = vrot.lane.b32.xlu0 %v651, 32
  %v671 = vpop.permute.xlu0 %670
  %674 = vrot.lane.b32.xlu0 %v668, 64
  %v675 = vpop.permute.xlu0 %674
  %v677 = vsel %vm233, %v671, %v675
  %v678 = vpack.c.bf16 %v677, %v677
  %v680 = vsel %vm276, %v678, 0
  %682 = vmatprep.subr.bf16.mxu0 %v261
  %683 = vmatpush1.bf16.msra.mxu0 %v260
  %684 = vmatprep.subr.bf16.mxu0 %v263
  %685 = vmatpush1.bf16.msra.mxu0 %v262
  %686 = vmatprep.subr.bf16.mxu0 %v265
  %687 = vmatpush1.bf16.msra.mxu0 %v264
  %688 = vmatprep.subr.bf16.mxu0 %v267
  %689 = vmatpush1.bf16.msra.mxu0 %v266
  %690 = vmatprep.subr.bf16.mxu0 0
  %691 = vmatpush1.bf16.msra.mxu0 0
  %692 = vmatprep.subr.bf16.mxu0 0
  %693 = vmatpush1.bf16.msra.mxu0 0
  %694 = vmatprep.subr.bf16.mxu0 0
  %695 = vmatpush1.bf16.msra.mxu0 0
  %696 = vmatprep.subr.bf16.mxu0 0
  %697 = vmatpush1.bf16.msra.mxu0 0
  %698 = vmatprep.subr.bf16.mxu0 0
  %699 = vmatpush1.bf16.msra.mxu0 0
  %700 = vmatprep.subr.bf16.mxu0 0
  %701 = vmatpush1.bf16.msra.mxu0 0
  %702 = vmatprep.subr.bf16.mxu0 0
  %703 = vmatpush1.bf16.msra.mxu0 0
  %704 = vmatprep.subr.bf16.mxu0 0
  %705 = vmatpush1.bf16.msra.mxu0 0
  %706 = vmatprep.subr.bf16.mxu0 0
  %707 = vmatpush1.bf16.msra.mxu0 0
  %708 = vmatprep.subr.bf16.mxu0 0
  %709 = vmatpush1.bf16.msra.mxu0 0
  %710 = vmatprep.subr.bf16.mxu0 0
  %711 = vmatpush1.bf16.msra.mxu0 0
  %712 = vmatprep.subr.bf16.mxu0 0
  %713 = vmatpush1.bf16.msra.mxu0 0
  %714 = vmatprep.mubr.bf16.mxu0 0
  %715 = vmatmul.mubr.bf16.gmra.mrb[0].mxu0 %v680
  %v716 = vpop.f32.mrb[0].mxu0
  %v717 = vadd.f32 0.0, %v716
  %v718 = vpop.f32.mrb[0].mxu0
  %v719 = vadd.f32 0.0, %v718
  %v720 = vpop.f32.mrb[0].mxu0
  %v721 = vpop.f32.mrb[0].mxu0
  %722 = vdwg.mxu0
  %v723 = vld [vmem:[#allocation2 + $0x50] sm:$0xff]
  %v724 = vld [vmem:[#allocation2 + $0x58] sm:$0xff]
  %v725 = vadd.f32 %v723, %v717
  %v726 = vadd.f32 %v724, %v719
  %v727 = vmul.f32 %v725, %v209
  %v728 = vmul.f32 %v726, %v210
  %v729 = vtanh.pop %v727
  %v730 = vtanh.pop %v728
  %v731 = vmul.f32 %v729, %v209
  %v732 = vmul.f32 %v730, %v210
  %v733 = vadd.f32 %v731, %v211
  %v734 = vadd.f32 %v732, %v212
  %v735 = vmul.f32 %v733, %v645
  %737 = vrot.lane.b32.xlu0 %v733, 64
  %v738 = vpop.permute.xlu0 %737
  %v740 = vmul.f32 %v733, %v738
  %742 = vrot.lane.b32.xlu0 %v740, 32
  %v743 = vpop.permute.xlu0 %742
  %v745 = vadd.f32 %v735, %v743
  %v746 = vtanh.pop %v745
  %748 = vrot.lane.b32.xlu0 %v746, 64
  %v749 = vpop.permute.xlu0 %748
  %v751 = vmul.f32 %v733, %v749
  %v752 = vmul.f32 %v734, %v662
  %754 = vrot.lane.b32.xlu0 %v734, 64
  %v755 = vpop.permute.xlu0 %754
  %v757 = vmul.f32 %v734, %v755
  %759 = vrot.lane.b32.xlu0 %v757, 32
  %v760 = vpop.permute.xlu0 %759
  %v762 = vadd.f32 %v752, %v760
  %v763 = vtanh.pop %v762
  %765 = vrot.lane.b32.xlu0 %v763, 64
  %v766 = vpop.permute.xlu0 %765
  %v768 = vmul.f32 %v734, %v766
  %770 = vrot.lane.b32.xlu0 %v751, 32
  %v771 = vpop.permute.xlu0 %770
  %774 = vrot.lane.b32.xlu0 %v768, 64
  %v775 = vpop.permute.xlu0 %774
  %v777 = vsel %vm233, %v771, %v775
  %v778 = vpack.c.bf16 %v777, %v777
  %v780 = vsel %vm276, %v778, 0
  %782 = vmatprep.subr.bf16.mxu0 %v261
  %783 = vmatpush1.bf16.msra.mxu0 %v260
  %784 = vmatprep.subr.bf16.mxu0 %v263
  %785 = vmatpush1.bf16.msra.mxu0 %v262
  %786 = vmatprep.subr.bf16.mxu0 %v265
  %787 = vmatpush1.bf16.msra.mxu0 %v264
  %788 = vmatprep.subr.bf16.mxu0 %v267
  %789 = vmatpush1.bf16.msra.mxu0 %v266
  %790 = vmatprep.subr.bf16.mxu0 0
  %791 = vmatpush1.bf16.msra.mxu0 0
  %792 = vmatprep.subr.bf16.mxu0 0
  %793 = vmatpush1.bf16.msra.mxu0 0
  %794 = vmatprep.subr.bf16.mxu0 0
  %795 = vmatpush1.bf16.msra.mxu0 0
  %796 = vmatprep.subr.bf16.mxu0 0
  %797 = vmatpush1.bf16.msra.mxu0 0
  %798 = vmatprep.subr.bf16.mxu0 0
  %799 = vmatpush1.bf16.msra.mxu0 0
  %800 = vmatprep.subr.bf16.mxu0 0
  %801 = vmatpush1.bf16.msra.mxu0 0
  %802 = vmatprep.subr.bf16.mxu0 0
  %803 = vmatpush1.bf16.msra.mxu0 0
  %804 = vmatprep.subr.bf16.mxu0 0
  %805 = vmatpush1.bf16.msra.mxu0 0
  %806 = vmatprep.subr.bf16.mxu0 0
  %807 = vmatpush1.bf16.msra.mxu0 0
  %808 = vmatprep.subr.bf16.mxu0 0
  %809 = vmatpush1.bf16.msra.mxu0 0
  %810 = vmatprep.subr.bf16.mxu0 0
  %811 = vmatpush1.bf16.msra.mxu0 0
  %812 = vmatprep.subr.bf16.mxu0 0
  %813 = vmatpush1.bf16.msra.mxu0 0
  %814 = vmatprep.mubr.bf16.mxu0 0
  %815 = vmatmul.mubr.bf16.gmra.mrb[0].mxu0 %v780
  %v816 = vpop.f32.mrb[0].mxu0
  %v817 = vadd.f32 0.0, %v816
  %v818 = vpop.f32.mrb[0].mxu0
  %v819 = vadd.f32 0.0, %v818
  %v820 = vpop.f32.mrb[0].mxu0
  %v821 = vpop.f32.mrb[0].mxu0
  %822 = vdwg.mxu0
  %v823 = vld [vmem:[#allocation2 + $0x60] sm:$0xff]
  %v824 = vld [vmem:[#allocation2 + $0x68] sm:$0xff]
  %v825 = vadd.f32 %v823, %v817
  %v826 = vadd.f32 %v824, %v819
  %v827 = vmul.f32 %v825, %v209
  %v828 = vmul.f32 %v826, %v210
  %v829 = vtanh.pop %v827
  %v830 = vtanh.pop %v828
  %v831 = vmul.f32 %v829, %v209
  %v832 = vmul.f32 %v830, %v210
  %v833 = vadd.f32 %v831, %v211
  %v834 = vadd.f32 %v832, %v212
  %v835 = vmul.f32 %v833, %v745
  %837 = vrot.lane.b32.xlu0 %v833, 64
  %v838 = vpop.permute.xlu0 %837
  %v840 = vmul.f32 %v833, %v838
  %842 = vrot.lane.b32.xlu0 %v840, 32
  %v843 = vpop.permute.xlu0 %842
  %v845 = vadd.f32 %v835, %v843
  %v846 = vtanh.pop %v845
  %848 = vrot.lane.b32.xlu0 %v846, 64
  %v849 = vpop.permute.xlu0 %848
  %v851 = vmul.f32 %v833, %v849
  %v852 = vmul.f32 %v834, %v762
  %854 = vrot.lane.b32.xlu0 %v834, 64
  %v855 = vpop.permute.xlu0 %854
  %v857 = vmul.f32 %v834, %v855
  %859 = vrot.lane.b32.xlu0 %v857, 32
  %v860 = vpop.permute.xlu0 %859
  %v862 = vadd.f32 %v852, %v860
  %v863 = vtanh.pop %v862
  %865 = vrot.lane.b32.xlu0 %v863, 64
  %v866 = vpop.permute.xlu0 %865
  %v868 = vmul.f32 %v834, %v866
  %870 = vrot.lane.b32.xlu0 %v851, 32
  %v871 = vpop.permute.xlu0 %870
  %874 = vrot.lane.b32.xlu0 %v868, 64
  %v875 = vpop.permute.xlu0 %874
  %v877 = vsel %vm233, %v871, %v875
  %v878 = vpack.c.bf16 %v877, %v877
  %v880 = vsel %vm276, %v878, 0
  %882 = vmatprep.subr.bf16.mxu0 %v261
  %883 = vmatpush1.bf16.msra.mxu0 %v260
  %884 = vmatprep.subr.bf16.mxu0 %v263
  %885 = vmatpush1.bf16.msra.mxu0 %v262
  %886 = vmatprep.subr.bf16.mxu0 %v265
  %887 = vmatpush1.bf16.msra.mxu0 %v264
  %888 = vmatprep.subr.bf16.mxu0 %v267
  %889 = vmatpush1.bf16.msra.mxu0 %v266
  %890 = vmatprep.subr.bf16.mxu0 0
  %891 = vmatpush1.bf16.msra.mxu0 0
  %892 = vmatprep.subr.bf16.mxu0 0
  %893 = vmatpush1.bf16.msra.mxu0 0
  %894 = vmatprep.subr.bf16.mxu0 0
  %895 = vmatpush1.bf16.msra.mxu0 0
  %896 = vmatprep.subr.bf16.mxu0 0
  %897 = vmatpush1.bf16.msra.mxu0 0
  %898 = vmatprep.subr.bf16.mxu0 0
  %899 = vmatpush1.bf16.msra.mxu0 0
  %900 = vmatprep.subr.bf16.mxu0 0
  %901 = vmatpush1.bf16.msra.mxu0 0
  %902 = vmatprep.subr.bf16.mxu0 0
  %903 = vmatpush1.bf16.msra.mxu0 0
  %904 = vmatprep.subr.bf16.mxu0 0
  %905 = vmatpush1.bf16.msra.mxu0 0
  %906 = vmatprep.subr.bf16.mxu0 0
  %907 = vmatpush1.bf16.msra.mxu0 0
  %908 = vmatprep.subr.bf16.mxu0 0
  %909 = vmatpush1.bf16.msra.mxu0 0
  %910 = vmatprep.subr.bf16.mxu0 0
  %911 = vmatpush1.bf16.msra.mxu0 0
  %912 = vmatprep.subr.bf16.mxu0 0
  %913 = vmatpush1.bf16.msra.mxu0 0
  %914 = vmatprep.mubr.bf16.mxu0 0
  %915 = vmatmul.mubr.bf16.gmra.mrb[0].mxu0 %v880
  %v916 = vpop.f32.mrb[0].mxu0
  %v917 = vadd.f32 0.0, %v916
  %v918 = vpop.f32.mrb[0].mxu0
  %v919 = vadd.f32 0.0, %v918
  %v920 = vpop.f32.mrb[0].mxu0
  %v921 = vpop.f32.mrb[0].mxu0
  %922 = vdwg.mxu0
  %v923 = vld [vmem:[#allocation2 + $0x70] sm:$0xff]
  %v924 = vld [vmem:[#allocation2 + $0x78] sm:$0xff]
  %v925 = vadd.f32 %v923, %v917
  %v926 = vadd.f32 %v924, %v919
  %v927 = vmul.f32 %v925, %v209
  %v928 = vmul.f32 %v926, %v210
  %v929 = vtanh.pop %v927
  %v930 = vtanh.pop %v928
  %v931 = vmul.f32 %v929, %v209
  %v932 = vmul.f32 %v930, %v210
  %v933 = vadd.f32 %v931, %v211
  %v934 = vadd.f32 %v932, %v212
  %v935 = vmul.f32 %v933, %v845
  %937 = vrot.lane.b32.xlu0 %v933, 64
  %v938 = vpop.permute.xlu0 %937
  %v940 = vmul.f32 %v933, %v938
  %942 = vrot.lane.b32.xlu0 %v940, 32
  %v943 = vpop.permute.xlu0 %942
  %v945 = vadd.f32 %v935, %v943
  %v946 = vtanh.pop %v945
  %948 = vrot.lane.b32.xlu0 %v946, 64
  %v949 = vpop.permute.xlu0 %948
  %v951 = vmul.f32 %v933, %v949
  %v952 = vmul.f32 %v934, %v862
  %954 = vrot.lane.b32.xlu0 %v934, 64
  %v955 = vpop.permute.xlu0 %954
  %v957 = vmul.f32 %v934, %v955
  %959 = vrot.lane.b32.xlu0 %v957, 32
  %v960 = vpop.permute.xlu0 %959
  %v962 = vadd.f32 %v952, %v960
  %v963 = vtanh.pop %v962
  %965 = vrot.lane.b32.xlu0 %v963, 64
  %v966 = vpop.permute.xlu0 %965
  %v968 = vmul.f32 %v934, %v966
  %970 = vrot.lane.b32.xlu0 %v951, 32
  %v971 = vpop.permute.xlu0 %970
  %974 = vrot.lane.b32.xlu0 %v968, 64
  %v975 = vpop.permute.xlu0 %974
  %v977 = vsel %vm233, %v971, %v975
  %v978 = vpack.c.bf16 %v977, %v977
  %v980 = vsel %vm276, %v978, 0
  %982 = vmatprep.subr.bf16.mxu0 %v261
  %983 = vmatpush1.bf16.msra.mxu0 %v260
  %984 = vmatprep.subr.bf16.mxu0 %v263
  %985 = vmatpush1.bf16.msra.mxu0 %v262
  %986 = vmatprep.subr.bf16.mxu0 %v265
  %987 = vmatpush1.bf16.msra.mxu0 %v264
  %988 = vmatprep.subr.bf16.mxu0 %v267
  %989 = vmatpush1.bf16.msra.mxu0 %v266
  %990 = vmatprep.subr.bf16.mxu0 0
  %991 = vmatpush1.bf16.msra.mxu0 0
  %992 = vmatprep.subr.bf16.mxu0 0
  %993 = vmatpush1.bf16.msra.mxu0 0
  %994 = vmatprep.subr.bf16.mxu0 0
  %995 = vmatpush1.bf16.msra.mxu0 0
  %996 = vmatprep.subr.bf16.mxu0 0
  %997 = vmatpush1.bf16.msra.mxu0 0
  %998 = vmatprep.subr.bf16.mxu0 0
  %999 = vmatpush1.bf16.msra.mxu0 0
  %1000 = vmatprep.subr.bf16.mxu0 0
  %1001 = vmatpush1.bf16.msra.mxu0 0
  %1002 = vmatprep.subr.bf16.mxu0 0
  %1003 = vmatpush1.bf16.msra.mxu0 0
  %1004 = vmatprep.subr.bf16.mxu0 0
  %1005 = vmatpush1.bf16.msra.mxu0 0
  %1006 = vmatprep.subr.bf16.mxu0 0
  %1007 = vmatpush1.bf16.msra.mxu0 0
  %1008 = vmatprep.subr.bf16.mxu0 0
  %1009 = vmatpush1.bf16.msra.mxu0 0
  %1010 = vmatprep.subr.bf16.mxu0 0
  %1011 = vmatpush1.bf16.msra.mxu0 0
  %1012 = vmatprep.subr.bf16.mxu0 0
  %1013 = vmatpush1.bf16.msra.mxu0 0
  %1014 = vmatprep.mubr.bf16.mxu0 0
  %1015 = vmatmul.mubr.bf16.gmra.mrb[0].mxu0 %v980
  %v1016 = vpop.f32.mrb[0].mxu0
  %v1017 = vpop.f32.mrb[0].mxu0
  %v1018 = vadd.f32 0.0, %v1017
  %v1019 = vpop.f32.mrb[0].mxu0
  %v1020 = vpop.f32.mrb[0].mxu0
  %1021 = vdwg.mxu0
  %v1022 = vadd.f32 %v924, %v1018
  %v1023 = vmul.f32 %v1022, %v210
  %v1024 = vtanh.pop %v1023
  %v1025 = vmul.f32 %v1024, %v210
  %v1026 = vadd.f32 %v1025, %v212
  %v1027 = vmul.f32 %v1026, %v962
  %1029 = vrot.lane.b32.xlu0 %v1026, 64
  %v1030 = vpop.permute.xlu0 %1029
  %v1032 = vmul.f32 %v1026, %v1030
  %1034 = vrot.lane.b32.xlu0 %v1032, 32
  %v1035 = vpop.permute.xlu0 %1034
  %v1037 = vadd.f32 %v1027, %v1035
  %v1038 = vtanh.pop %v1037
  %1040 = vrot.lane.b32.xlu0 %v1038, 64
  %v1041 = vpop.permute.xlu0 %1040
  %v1043 = vmul.f32 %v1026, %v1041
  %v1044 = vmax.f32 %v951, 0.0
  %v1045 = vmax.f32 %v1043, 0.0
  %v1046 = vld [vmem:[%s4] sm:$0xf]
  %v1047 = vld [vmem:[%s4 + $0x4] sm:$0xf]
  %v1048 = vld [vmem:[%s4 + $0x8] sm:$0xf]
  %v1049 = vld [vmem:[%s4 + $0xc] sm:$0xf]
  %v1050 = vpack.c.bf16 %v1045, %v1044
  %v1051 = vld [vmem:[%s5] sm:$0x1]
  %v1053 = vlaneseq
  %v1054 = vshrl.u32 %v1053, 7
  %v1055 = vsub.s32 0, %v1054
  %v1056 = vrot.slane %v1051, %v1055
  %1059 = vrot.lane.b32.xlu0 %v1050, 32
  %v1060 = vpop.permute.xlu0 %1059
  %v1065 = vunpack.c.l.b16 %v1046
  %v1066 = vunpack.c.l.b16 %v1047
  %v1067 = vunpack.c.l.b16 %v1048
  %v1068 = vunpack.c.l.b16 %v1049
  %v1069 = vpack.c.b16 %v1066, %v1065
  %v1070 = vpack.c.b16 %v1068, %v1067
  %v1074 = vsel %vm233, %v1060, 0
  %1076 = vmatprep.subr.bf16.mxu0 0
  %1077 = vmatpush1.bf16.msra.mxu0 %v1069
  %1078 = vmatprep.subr.bf16.mxu0 0
  %1079 = vmatpush1.bf16.msra.mxu0 %v1070
  %1080 = vmatprep.subr.bf16.mxu0 0
  %1081 = vmatpush1.bf16.msra.mxu0 0
  %1082 = vmatprep.subr.bf16.mxu0 0
  %1083 = vmatpush1.bf16.msra.mxu0 0
  %1084 = vmatprep.subr.bf16.mxu0 0
  %1085 = vmatpush1.bf16.msra.mxu0 0
  %1086 = vmatprep.subr.bf16.mxu0 0
  %1087 = vmatpush1.bf16.msra.mxu0 0
  %1088 = vmatprep.subr.bf16.mxu0 0
  %1089 = vmatpush1.bf16.msra.mxu0 0
  %1090 = vmatprep.subr.bf16.mxu0 0
  %1091 = vmatpush1.bf16.msra.mxu0 0
  %1092 = vmatprep.subr.bf16.mxu0 0
  %1093 = vmatpush1.bf16.msra.mxu0 0
  %1094 = vmatprep.subr.bf16.mxu0 0
  %1095 = vmatpush1.bf16.msra.mxu0 0
  %1096 = vmatprep.subr.bf16.mxu0 0
  %1097 = vmatpush1.bf16.msra.mxu0 0
  %1098 = vmatprep.subr.bf16.mxu0 0
  %1099 = vmatpush1.bf16.msra.mxu0 0
  %1100 = vmatprep.subr.bf16.mxu0 0
  %1101 = vmatpush1.bf16.msra.mxu0 0
  %1102 = vmatprep.subr.bf16.mxu0 0
  %1103 = vmatpush1.bf16.msra.mxu0 0
  %1104 = vmatprep.subr.bf16.mxu0 0
  %1105 = vmatpush1.bf16.msra.mxu0 0
  %1106 = vmatprep.subr.bf16.mxu0 0
  %1107 = vmatpush1.bf16.msra.mxu0 0
  %1108 = vmatprep.mubr.bf16.mxu0 0
  %1109 = vmatmul.mubr.bf16.gmra.mrb[0].mxu0 %v1074
  %v1110 = vpop.f32.mrb[0].mxu0
  %v1111 = vadd.f32 %v1056, %v1110
  %v1112 = vpop.f32.mrb[0].mxu0
  %v1113 = vpop.f32.mrb[0].mxu0
  %v1114 = vadd.f32 %v1056, %v1113
  %v1115 = vpop.f32.mrb[0].mxu0
  %1116 = vdwg.mxu0
  %v1117 = vmax.f32 %v1111, 0.0
  %v1118 = vmax.f32 %v1114, 0.0
  %v1119 = vld [vmem:[%s6] sm:$0xf]
  %v1120 = vld [vmem:[%s6 + $0x4] sm:$0xf]
  %v1121 = vld [vmem:[%s6 + $0x8] sm:$0xf]
  %v1122 = vld [vmem:[%s6 + $0xc] sm:$0xf]
  %v1123 = vld [vmem:[%s6 + $0x10] sm:$0xf]
  %v1124 = vld [vmem:[%s6 + $0x14] sm:$0xf]
  %v1125 = vld [vmem:[%s6 + $0x18] sm:$0xf]
  %v1126 = vld [vmem:[%s6 + $0x1c] sm:$0xf]
  %v1127 = vld [vmem:[%s6 + $0x20] sm:$0xf]
  %v1128 = vld [vmem:[%s6 + $0x24] sm:$0xf]
  %v1129 = vld [vmem:[%s6 + $0x28] sm:$0xf]
  %v1130 = vld [vmem:[%s6 + $0x2c] sm:$0xf]
  %v1131 = vld [vmem:[%s6 + $0x30] sm:$0xf]
  %v1132 = vld [vmem:[%s6 + $0x34] sm:$0xf]
  %v1133 = vld [vmem:[%s6 + $0x38] sm:$0xf]
  %v1134 = vld [vmem:[%s6 + $0x3c] sm:$0xf]
  %v1135 = vpack.c.bf16 %v1118, %v1117
  %v1136 = vld [vmem:[%s7] sm:$0x1]
  %v1138 = vlaneseq
  %v1139 = vshrl.u32 %v1138, 7
  %v1140 = vsub.s32 0, %v1139
  %v1141 = vrot.slane %v1136, %v1140
  %v1159 = vunpack.c.l.b16 %v1119
  %v1160 = vunpack.c.l.b16 %v1120
  %v1161 = vunpack.c.l.b16 %v1121
  %v1162 = vunpack.c.l.b16 %v1122
  %v1163 = vunpack.c.l.b16 %v1123
  %v1164 = vunpack.c.l.b16 %v1124
  %v1165 = vunpack.c.l.b16 %v1125
  %v1166 = vunpack.c.l.b16 %v1126
  %v1167 = vunpack.c.l.b16 %v1127
  %v1168 = vunpack.c.l.b16 %v1128
  %v1169 = vunpack.c.l.b16 %v1129
  %v1170 = vunpack.c.l.b16 %v1130
  %v1171 = vunpack.c.l.b16 %v1131
  %v1172 = vunpack.c.l.b16 %v1132
  %v1173 = vunpack.c.l.b16 %v1133
  %v1174 = vunpack.c.l.b16 %v1134
  %v1175 = vpack.c.b16 %v1160, %v1159
  %v1176 = vpack.c.b16 %v1162, %v1161
  %v1177 = vpack.c.b16 %v1164, %v1163
  %v1178 = vpack.c.b16 %v1166, %v1165
  %v1179 = vpack.c.b16 %v1168, %v1167
  %v1180 = vpack.c.b16 %v1170, %v1169
  %v1181 = vpack.c.b16 %v1172, %v1171
  %v1182 = vpack.c.b16 %v1174, %v1173
  %1191 = vmatprep.subr.bf16.mxu0 0
  %1192 = vmatpush1.bf16.msra.mxu0 %v1175
  %1193 = vmatprep.subr.bf16.mxu0 0
  %1194 = vmatpush1.bf16.msra.mxu0 %v1176
  %1195 = vmatprep.subr.bf16.mxu0 0
  %1196 = vmatpush1.bf16.msra.mxu0 %v1177
  %1197 = vmatprep.subr.bf16.mxu0 0
  %1198 = vmatpush1.bf16.msra.mxu0 %v1178
  %1199 = vmatprep.subr.bf16.mxu0 0
  %1200 = vmatpush1.bf16.msra.mxu0 %v1179
  %1201 = vmatprep.subr.bf16.mxu0 0
  %1202 = vmatpush1.bf16.msra.mxu0 %v1180
  %1203 = vmatprep.subr.bf16.mxu0 0
  %1204 = vmatpush1.bf16.msra.mxu0 %v1181
  %1205 = vmatprep.subr.bf16.mxu0 0
  %1206 = vmatpush1.bf16.msra.mxu0 %v1182
  %1207 = vmatprep.subr.bf16.mxu0 0
  %1208 = vmatpush1.bf16.msra.mxu0 0
  %1209 = vmatprep.subr.bf16.mxu0 0
  %1210 = vmatpush1.bf16.msra.mxu0 0
  %1211 = vmatprep.subr.bf16.mxu0 0
  %1212 = vmatpush1.bf16.msra.mxu0 0
  %1213 = vmatprep.subr.bf16.mxu0 0
  %1214 = vmatpush1.bf16.msra.mxu0 0
  %1215 = vmatprep.subr.bf16.mxu0 0
  %1216 = vmatpush1.bf16.msra.mxu0 0
  %1217 = vmatprep.subr.bf16.mxu0 0
  %1218 = vmatpush1.bf16.msra.mxu0 0
  %1219 = vmatprep.subr.bf16.mxu0 0
  %1220 = vmatpush1.bf16.msra.mxu0 0
  %1221 = vmatprep.subr.bf16.mxu0 0
  %1222 = vmatpush1.bf16.msra.mxu0 0
  %1223 = vmatprep.mubr.bf16.mxu0 0
  %1224 = vmatmul.mubr.bf16.gmra.mrb[0].mxu0 %v1135
  %v1225 = vpop.f32.mrb[0].mxu0
  %v1226 = vadd.f32 %v1141, %v1225
  %v1227 = vpop.f32.mrb[0].mxu0
  %v1228 = vpop.f32.mrb[0].mxu0
  %v1229 = vadd.f32 %v1141, %v1228
  %v1230 = vpop.f32.mrb[0].mxu0
  %1231 = vdwg.mxu0
  %1232 = vst [vmem:[%s8] sm:$0xff] %v1226
  %1233 = vst [vmem:[%s8 + $0x8] sm:$0xff] %v1229
  // Predicated region
  $region34: #{lstm1_forward.1} parent=0 // pred_check
    _
  $region35: #{lstm1_forward.1} parent=0 // pred_check_branch
    %1235 = sbr.rel (0) target = $region37
  $region36: #{lstm1_forward.1} parent=0 // pred_region
    _
  $region37: #{lstm1_forward.1} parent=0 // pred_fallthru
    _
  // Predicated region
  $region38: #{lstm1_forward.1} parent=0 // pred_check
    _
  $region39: #{lstm1_forward.1} parent=0 // pred_check_branch
    %1237 = sbr.rel (0) target = $region41
  $region40: #{lstm1_forward.1} parent=0 // pred_region
    _
  $region41: #{lstm1_forward.1} parent=0 // pred_fallthru
    _

</llo_original>
